<compile_context>
chip_gen: v7x
topology: tpu7x:2x2x1
jax: 0.10.0
libtpu: 0.0.40
codegen_flags: <defaults>
</compile_context>

<pallas_src>
import math

import jax
import jax.numpy as jnp
from jax.experimental import pallas as pl
from jax.experimental.pallas import tpu as pltpu


# ----------------------------- fused Pallas kernel ------------------------------

def _dotgat_layer(x, w_hfd, bias3, num_heads, out_feats):
    """One DotGatConv layer for one graph, head-batched, entirely in VMEM/vregs.

    x      : (N, F_in)     current node features
    w_hfd  : (H, F_in, D)  fc weight, pre-arranged per head in the wrapper
    bias3  : (H, N, N)     additive adjacency mask (0 on edges, -1e30 off)
    returns: (N, H*D)      == x.view(N, -1) of the PyTorch module
    """
    n, f_in = x.shape
    h, d = num_heads, out_feats

    # Projection with H as a batch dim (one batched MXU pass, no per-head lane slices).
    xb = jnp.broadcast_to(x[None], (h, n, f_in))                         # (H,N,F)
    ftr = jnp.einsum("hnf,hfd->hnd", xb, w_hfd,
                     preferred_element_type=jnp.float32)                 # (H,N,D)

    # Fold 1/sqrt(D) into one (H,N,D) multiply instead of scaling (H,N,N) scores.
    ft_s = ftr * jnp.float32(1.0 / math.sqrt(d))

    # scores[h,i,j] = scale * (ft[h,i] . ft[h,j]) — single batched dot_general.
    scores = jnp.einsum("hid,hjd->hij", ft_s, ftr,
                        preferred_element_type=jnp.float32)              # (H,N,N)
    masked = scores + bias3
    m = jnp.max(masked, axis=-1, keepdims=True)
    p = jnp.exp(masked - m)                     # non-edges underflow to exactly 0 (f32)
    denom = jnp.sum(p, axis=-1, keepdims=True)                           # (H,N,1)

    # Aggregate first, normalize after: the (H,N,N) divide becomes an (H,N,D) multiply
    # and the approximate reciprocal runs on the otherwise-idle EUP.
    agg = jnp.einsum("hij,hjd->hid", p, ftr,
                     preferred_element_type=jnp.float32)                 # (H,N,D)
    agg = agg * pl.reciprocal(denom, approx=True)

    # Back to the (N, H*D) layout of x.view(N, -1) for the next projection / Linear.
    return jnp.concatenate([agg[i] for i in range(h)], axis=-1)


def make_graph_encoder_kernel(num_layers, num_heads, out_feats):
    def kernel(x_ref, bias_ref, *rest):
        # rest = (w_hfd_0, ..., w_hfd_{L-1}, linear_w_t, linear_b, o_ref)
        w_refs = rest[:num_layers]
        lw_ref, lb_ref, o_ref = rest[num_layers:num_layers + 3]

        n = x_ref.shape[0]
        # Mask bias is precomputed in the wrapper (no in-kernel where; adj never lives
        # in VMEM). Broadcast over heads ONCE, shared by both layers.
        bias3 = jnp.broadcast_to(bias_ref[...][None], (num_heads, n, n))

        x = x_ref[...]                                                   # (N, F_in) f32
        for l in range(num_layers):
            x = _dotgat_layer(x, w_refs[l][...], bias3, num_heads, out_feats)

        # Final nn.Linear (weight passed pre-transposed as [H*D, out_feats]).
        y = jnp.dot(x, lw_ref[...], preferred_element_type=jnp.float32) + lb_ref[...]
        o_ref[...] = y.astype(o_ref.dtype)                               # single final store
    return kernel


# ------------------------------- wrapper ----------------------------------

def graph_encoder_forward(x, adj, params, *, num_heads, out_feats):
    """x: (B, N, F_in) node features for B graphs; adj: (B, N, N) with adj[b, dst, src]."""
    b, n, f_in = x.shape
    layer_ws = params["layer_ws"]                      # [(F_in, H*D), (H*D, H*D)]
    num_layers = len(layer_ws)

    # Pre-arrange DotGat weights per head: (F, H*D) -> (H, F, D). Pure JAX, done once.
    w_hfd = [w.reshape(w.shape[0], num_heads, out_feats).transpose(1, 0, 2)
             for w in layer_ws]
    # Precompute the additive mask bias outside the kernel (halves the (N,N) VMEM
    # footprint and removes an (N,N) compare+select per call).
    mask_bias = jnp.where(adj > 0, jnp.float32(0.0), jnp.float32(-1e30))

    kern = make_graph_encoder_kernel(num_layers, num_heads, out_feats)

    def graph_spec(shape):   # per-graph block, leading batch dim squeezed out
        return pl.BlockSpec((None,) + shape, lambda i: (i,) + (0,) * len(shape))

    def const_spec(shape):   # constant block index -> weights not re-DMA'd per step
        return pl.BlockSpec(shape, lambda i: (0,) * len(shape))

    in_specs = ([graph_spec((n, f_in)), graph_spec((n, n))]
                + [const_spec(w.shape) for w in w_hfd]
                + [const_spec(params["linear_w_t"].shape),
                   const_spec(params["linear_b"].shape)])

    # TODO(synk): for large N, grid additionally over dst-node tiles with an online
    #             (flash-style) softmax over src tiles, keep layer-1 features for all
    #             nodes resident in VMEM scratch, and pack outputs lane-dense.
    return pl.pallas_call(
        kern,
        out_shape=jax.ShapeDtypeStruct((b, n, out_feats), jnp.float32),
        grid=(b,),
        in_specs=in_specs,
        out_specs=graph_spec((n, out_feats)),
        compiler_params=pltpu.CompilerParams(dimension_semantics=("parallel",)),
    )(x, mask_bias, *w_hfd, params["linear_w_t"], params["linear_b"])


# --------------------------- pure-JAX reference -----------------------------

def _ref_forward_single(x, adj, params, *, num_heads, out_feats):
    for w in params["layer_ws"]:
        ft = x @ w
        ftr = ft.reshape(x.shape[0], num_heads, out_feats)
        scores = jnp.einsum("ihd,jhd->hij", ftr, ftr) / math.sqrt(out_feats)
        masked = jnp.where(adj[None] > 0, scores, -1e30)
        p = jnp.exp(masked - masked.max(-1, keepdims=True)) * adj[None]
        alpha = p / p.sum(-1, keepdims=True)
        out = jnp.einsum("hij,jhd->ihd", alpha, ftr)
        x = out.reshape(x.shape[0], num_heads * out_feats)
    return x @ params["linear_w_t"] + params["linear_b"]


# --------------------------------- main -------------------------------------

if __name__ == "__main__":
    # Module config (small, consistent with GraphEncoder('DotGATConv', num_layers=2)).
    B = 4            # graphs batched into one pallas_call (grid axis, "parallel")
    N = 8            # nodes per graph
    in_feats = 16
    out_feats = 8
    num_heads = 3
    hidden = num_heads * out_feats   # 24

    key = jax.random.PRNGKey(0)
    k_x, k_w0, k_w1, k_lw, k_lb = jax.random.split(key, 5)

    # Node features for B graphs.
    x = jax.random.normal(k_x, (B, N, in_feats), dtype=jnp.float32)

    # Deterministic per-graph adjacency: ring + self-loops + one graph-dependent skip edge.
    idx = jnp.arange(N)

    def make_adj(b):
        a = jnp.zeros((N, N), dtype=jnp.float32)
        a = a.at[idx, idx].set(1.0)
        a = a.at[idx, (idx + 1) % N].set(1.0)
        a = a.at[idx, (idx - 1) % N].set(1.0)
        a = a.at[idx, (idx + 2 + b) % N].set(1.0)
        return a

    adj = jnp.stack([make_adj(b) for b in range(B)], axis=0)

    # Parameters (deterministic init mimicking nn.Linear uniform(-1/sqrt(fan_in), +)).
    def lin_init(k, fan_in, shape):
        bound = 1.0 / math.sqrt(fan_in)
        return jax.random.uniform(k, shape, jnp.float32, -bound, bound)

    params = {
        # DotGatConv fc weights, stored as [F_in, H*D] (i.e. W^T of nn.Linear, bias=False)
        "layer_ws": [
            lin_init(k_w0, in_feats, (in_feats, hidden)),
            lin_init(k_w1, hidden, (hidden, hidden)),
        ],
        # final nn.Linear(hidden, out_feats): weight^T [hidden, out_feats], bias [1, out_feats]
        "linear_w_t": lin_init(k_lw, hidden, (hidden, out_feats)),
        "linear_b": lin_init(k_lb, hidden, (1, out_feats)),
    }

    out = graph_encoder_forward(x, adj, params, num_heads=num_heads, out_feats=out_feats)
    out = jax.block_until_ready(out)

    ref = jax.vmap(
        lambda xb, ab: _ref_forward_single(xb, ab, params,
                                           num_heads=num_heads, out_feats=out_feats)
    )(x, adj)

    assert out.shape == (B, N, out_feats), out.shape
    # Tolerance loosened slightly vs. exact math because the kernel uses the EUP
    # approximate reciprocal for the softmax normalization.
    assert jnp.allclose(out, ref, atol=5e-3, rtol=5e-3), "mismatch vs reference"

    print("KERNEL_OK")
</pallas_src>

<mosaic_0001>
module attributes {stable_mosaic.version = 11 : i64} {
  func.func @kernel(%arg0: i32, %arg1: memref<1x8x16xf32, #tpu.memory_space<vmem>>, %arg2: memref<1x8x8xf32, #tpu.memory_space<vmem>>, %arg3: memref<3x16x8xf32, #tpu.memory_space<vmem>>, %arg4: memref<3x24x8xf32, #tpu.memory_space<vmem>>, %arg5: memref<24x8xf32, #tpu.memory_space<vmem>>, %arg6: memref<1x8xf32, #tpu.memory_space<vmem>>, %arg7: memref<1x8x8xf32, #tpu.memory_space<vmem>>) attributes {dimension_semantics = [#tpu.dimension_semantics<parallel>], iteration_bounds = array<i64: 4>, scalar_prefetch = 0 : i64, scratch_operands = 0 : i64, tpu.core_type = #tpu.core_type<tc>, window_params = [{transform_indices = @transform_0, window_bounds = array<i64: 1, 8, 16>}, {transform_indices = @transform_1, window_bounds = array<i64: 1, 8, 8>}, {pipeline_mode = #tpu.pipeline_mode<synchronous>, transform_indices = @transform_2, window_bounds = array<i64: 3, 16, 8>}, {pipeline_mode = #tpu.pipeline_mode<synchronous>, transform_indices = @transform_3, window_bounds = array<i64: 3, 24, 8>}, {pipeline_mode = #tpu.pipeline_mode<synchronous>, transform_indices = @transform_4, window_bounds = array<i64: 24, 8>}, {pipeline_mode = #tpu.pipeline_mode<synchronous>, transform_indices = @transform_5, window_bounds = array<i64: 1, 8>}, {transform_indices = @transform_6, window_bounds = array<i64: 1, 8, 8>}]} {
    %c0 = arith.constant 0 : index
    %c0_0 = arith.constant 0 : index
    %c0_1 = arith.constant 0 : index
    %0 = vector.load %arg2[%c0, %c0_0, %c0_1] : memref<1x8x8xf32, #tpu.memory_space<vmem>>, vector<1x8x8xf32>
    %1 = vector.shape_cast %0 : vector<1x8x8xf32> to vector<8x8xf32>
    %2 = vector.shape_cast %1 : vector<8x8xf32> to vector<1x8x8xf32>
    %3 = vector.shape_cast %2 : vector<1x8x8xf32> to vector<1x8x8xf32>
    %4 = vector.broadcast %3 : vector<1x8x8xf32> to vector<3x8x8xf32>
    %c0_2 = arith.constant 0 : index
    %c0_3 = arith.constant 0 : index
    %c0_4 = arith.constant 0 : index
    %5 = vector.load %arg1[%c0_2, %c0_3, %c0_4] : memref<1x8x16xf32, #tpu.memory_space<vmem>>, vector<1x8x16xf32>
    %6 = vector.shape_cast %5 : vector<1x8x16xf32> to vector<8x16xf32>
    %c0_5 = arith.constant 0 : index
    %c0_6 = arith.constant 0 : index
    %c0_7 = arith.constant 0 : index
    %7 = vector.load %arg3[%c0_5, %c0_6, %c0_7] : memref<3x16x8xf32, #tpu.memory_space<vmem>>, vector<3x16x8xf32>
    %8 = vector.shape_cast %6 : vector<8x16xf32> to vector<1x8x16xf32>
    %9 = vector.shape_cast %8 : vector<1x8x16xf32> to vector<1x8x16xf32>
    %10 = vector.broadcast %9 : vector<1x8x16xf32> to vector<3x8x16xf32>
    "tpu.trace_start"() <{level = 10 : i32, message = "hnf,hfd->hnd"}> : () -> ()
    %cst = arith.constant dense<0.000000e+00> : vector<3x8x8xf32>
    %11 = tpu.matmul %10, %7, %cst {dimension_numbers = #tpu.dot_dimension_numbers<[2], [1], [1], [2], [0, 0, 0, 1, 1, 2], [0], [0]>} : vector<3x8x16xf32>, vector<3x16x8xf32>, vector<3x8x8xf32> -> vector<3x8x8xf32>
    "tpu.trace_stop"() : () -> ()
    %cst_8 = arith.constant 0.353553385 : f32
    %12 = vector.broadcast %cst_8 : f32 to vector<3x8x8xf32>
    %13 = arith.mulf %11, %12 : vector<3x8x8xf32>
    "tpu.trace_start"() <{level = 10 : i32, message = "hid,hjd->hij"}> : () -> ()
    %cst_9 = arith.constant dense<0.000000e+00> : vector<3x8x8xf32>
    %14 = tpu.matmul %13, %11, %cst_9 {dimension_numbers = #tpu.dot_dimension_numbers<[2], [2], [1], [1], [0, 0, 0, 1, 1, 1], [0], [0]>} : vector<3x8x8xf32>, vector<3x8x8xf32>, vector<3x8x8xf32> -> vector<3x8x8xf32>
    "tpu.trace_stop"() : () -> ()
    %15 = arith.addf %14, %4 : vector<3x8x8xf32>
    %cst_10 = arith.constant dense<0xFF800000> : vector<3x8xf32>
    %16 = vector.multi_reduction <maximumf>, %15, %cst_10 [2] : vector<3x8x8xf32> to vector<3x8xf32>
    %17 = vector.shape_cast %16 : vector<3x8xf32> to vector<3x8x1xf32>
    %18 = vector.broadcast %17 : vector<3x8x1xf32> to vector<3x8x8xf32>
    %19 = arith.subf %15, %18 : vector<3x8x8xf32>
    %20 = math.exp %19 : vector<3x8x8xf32>
    %cst_11 = arith.constant dense<0.000000e+00> : vector<3x8xf32>
    %21 = vector.multi_reduction <add>, %20, %cst_11 [2] : vector<3x8x8xf32> to vector<3x8xf32>
    %22 = vector.shape_cast %21 : vector<3x8xf32> to vector<3x8x1xf32>
    "tpu.trace_start"() <{level = 10 : i32, message = "hij,hjd->hid"}> : () -> ()
    %cst_12 = arith.constant dense<0.000000e+00> : vector<3x8x8xf32>
    %23 = tpu.matmul %20, %11, %cst_12 {dimension_numbers = #tpu.dot_dimension_numbers<[2], [1], [1], [2], [0, 0, 0, 1, 1, 2], [0], [0]>} : vector<3x8x8xf32>, vector<3x8x8xf32>, vector<3x8x8xf32> -> vector<3x8x8xf32>
    "tpu.trace_stop"() : () -> ()
    %24 = tpu.reciprocal %22 {approx = true} : vector<3x8x1xf32> -> vector<3x8x1xf32>
    %25 = vector.broadcast %24 : vector<3x8x1xf32> to vector<3x8x8xf32>
    %26 = arith.mulf %23, %25 : vector<3x8x8xf32>
    %27 = vector.extract_strided_slice %26 {offsets = [0, 0, 0], sizes = [1, 8, 8], strides = [1, 1, 1]} : vector<3x8x8xf32> to vector<1x8x8xf32>
    %28 = vector.shape_cast %27 : vector<1x8x8xf32> to vector<8x8xf32>
    %29 = vector.extract_strided_slice %26 {offsets = [1, 0, 0], sizes = [1, 8, 8], strides = [1, 1, 1]} : vector<3x8x8xf32> to vector<1x8x8xf32>
    %30 = vector.shape_cast %29 : vector<1x8x8xf32> to vector<8x8xf32>
    %31 = vector.extract_strided_slice %26 {offsets = [2, 0, 0], sizes = [1, 8, 8], strides = [1, 1, 1]} : vector<3x8x8xf32> to vector<1x8x8xf32>
    %32 = vector.shape_cast %31 : vector<1x8x8xf32> to vector<8x8xf32>
    %33 = tpu.concatenate %28, %30, %32 in 1 : vector<8x8xf32>, vector<8x8xf32>, vector<8x8xf32> -> vector<8x24xf32>
    %c0_13 = arith.constant 0 : index
    %c0_14 = arith.constant 0 : index
    %c0_15 = arith.constant 0 : index
    %34 = vector.load %arg4[%c0_13, %c0_14, %c0_15] : memref<3x24x8xf32, #tpu.memory_space<vmem>>, vector<3x24x8xf32>
    %35 = vector.shape_cast %33 : vector<8x24xf32> to vector<1x8x24xf32>
    %36 = vector.shape_cast %35 : vector<1x8x24xf32> to vector<1x8x24xf32>
    %37 = vector.broadcast %36 : vector<1x8x24xf32> to vector<3x8x24xf32>
    "tpu.trace_start"() <{level = 10 : i32, message = "hnf,hfd->hnd"}> : () -> ()
    %cst_16 = arith.constant dense<0.000000e+00> : vector<3x8x8xf32>
    %38 = tpu.matmul %37, %34, %cst_16 {dimension_numbers = #tpu.dot_dimension_numbers<[2], [1], [1], [2], [0, 0, 0, 1, 1, 2], [0], [0]>} : vector<3x8x24xf32>, vector<3x24x8xf32>, vector<3x8x8xf32> -> vector<3x8x8xf32>
    "tpu.trace_stop"() : () -> ()
    %cst_17 = arith.constant 0.353553385 : f32
    %39 = vector.broadcast %cst_17 : f32 to vector<3x8x8xf32>
    %40 = arith.mulf %38, %39 : vector<3x8x8xf32>
    "tpu.trace_start"() <{level = 10 : i32, message = "hid,hjd->hij"}> : () -> ()
    %cst_18 = arith.constant dense<0.000000e+00> : vector<3x8x8xf32>
    %41 = tpu.matmul %40, %38, %cst_18 {dimension_numbers = #tpu.dot_dimension_numbers<[2], [2], [1], [1], [0, 0, 0, 1, 1, 1], [0], [0]>} : vector<3x8x8xf32>, vector<3x8x8xf32>, vector<3x8x8xf32> -> vector<3x8x8xf32>
    "tpu.trace_stop"() : () -> ()
    %42 = arith.addf %41, %4 : vector<3x8x8xf32>
    %cst_19 = arith.constant dense<0xFF800000> : vector<3x8xf32>
    %43 = vector.multi_reduction <maximumf>, %42, %cst_19 [2] : vector<3x8x8xf32> to vector<3x8xf32>
    %44 = vector.shape_cast %43 : vector<3x8xf32> to vector<3x8x1xf32>
    %45 = vector.broadcast %44 : vector<3x8x1xf32> to vector<3x8x8xf32>
    %46 = arith.subf %42, %45 : vector<3x8x8xf32>
    %47 = math.exp %46 : vector<3x8x8xf32>
    %cst_20 = arith.constant dense<0.000000e+00> : vector<3x8xf32>
    %48 = vector.multi_reduction <add>, %47, %cst_20 [2] : vector<3x8x8xf32> to vector<3x8xf32>
    %49 = vector.shape_cast %48 : vector<3x8xf32> to vector<3x8x1xf32>
    "tpu.trace_start"() <{level = 10 : i32, message = "hij,hjd->hid"}> : () -> ()
    %cst_21 = arith.constant dense<0.000000e+00> : vector<3x8x8xf32>
    %50 = tpu.matmul %47, %38, %cst_21 {dimension_numbers = #tpu.dot_dimension_numbers<[2], [1], [1], [2], [0, 0, 0, 1, 1, 2], [0], [0]>} : vector<3x8x8xf32>, vector<3x8x8xf32>, vector<3x8x8xf32> -> vector<3x8x8xf32>
    "tpu.trace_stop"() : () -> ()
    %51 = tpu.reciprocal %49 {approx = true} : vector<3x8x1xf32> -> vector<3x8x1xf32>
    %52 = vector.broadcast %51 : vector<3x8x1xf32> to vector<3x8x8xf32>
    %53 = arith.mulf %50, %52 : vector<3x8x8xf32>
    %54 = vector.extract_strided_slice %53 {offsets = [0, 0, 0], sizes = [1, 8, 8], strides = [1, 1, 1]} : vector<3x8x8xf32> to vector<1x8x8xf32>
    %55 = vector.shape_cast %54 : vector<1x8x8xf32> to vector<8x8xf32>
    %56 = vector.extract_strided_slice %53 {offsets = [1, 0, 0], sizes = [1, 8, 8], strides = [1, 1, 1]} : vector<3x8x8xf32> to vector<1x8x8xf32>
    %57 = vector.shape_cast %56 : vector<1x8x8xf32> to vector<8x8xf32>
    %58 = vector.extract_strided_slice %53 {offsets = [2, 0, 0], sizes = [1, 8, 8], strides = [1, 1, 1]} : vector<3x8x8xf32> to vector<1x8x8xf32>
    %59 = vector.shape_cast %58 : vector<1x8x8xf32> to vector<8x8xf32>
    %60 = tpu.concatenate %55, %57, %59 in 1 : vector<8x8xf32>, vector<8x8xf32>, vector<8x8xf32> -> vector<8x24xf32>
    %c0_22 = arith.constant 0 : index
    %c0_23 = arith.constant 0 : index
    %61 = vector.load %arg5[%c0_22, %c0_23] : memref<24x8xf32, #tpu.memory_space<vmem>>, vector<24x8xf32>
    %cst_24 = arith.constant dense<0.000000e+00> : vector<8x8xf32>
    %62 = tpu.matmul %60, %61, %cst_24 {dimension_numbers = #tpu.dot_dimension_numbers<[1], [0], [0], [1], [0, 0, 1, 1], [], []>} : vector<8x24xf32>, vector<24x8xf32>, vector<8x8xf32> -> vector<8x8xf32>
    %c0_25 = arith.constant 0 : index
    %c0_26 = arith.constant 0 : index
    %63 = vector.load %arg6[%c0_25, %c0_26] : memref<1x8xf32, #tpu.memory_space<vmem>>, vector<1x8xf32>
    %64 = vector.broadcast %63 : vector<1x8xf32> to vector<8x8xf32>
    %65 = arith.addf %62, %64 : vector<8x8xf32>
    %c0_27 = arith.constant 0 : index
    %c0_28 = arith.constant 0 : index
    %c0_29 = arith.constant 0 : index
    %66 = vector.load %arg7[%c0_27, %c0_28, %c0_29] : memref<1x8x8xf32, #tpu.memory_space<vmem>>, vector<1x8x8xf32>
    %67 = vector.shape_cast %66 : vector<1x8x8xf32> to vector<8x8xf32>
    %68 = vector.shape_cast %65 : vector<8x8xf32> to vector<1x8x8xf32>
    tpu.vector_store %arg7[%c0_27, %c0_28, %c0_29], %68 {strides = array<i32>} : memref<1x8x8xf32, #tpu.memory_space<vmem>>, vector<1x8x8xf32>,
    return
  }
  func.func @transform_0(%arg0: i32) -> (i32, i32, i32) {
    %c0_i32 = arith.constant 0 : i32
    %c0_i32_0 = arith.constant 0 : i32
    %c0_i32_1 = arith.constant 0 : i32
    return %arg0, %c0_i32, %c0_i32_0 : i32, i32, i32
  }
  func.func @transform_1(%arg0: i32) -> (i32, i32, i32) {
    %c0_i32 = arith.constant 0 : i32
    %c0_i32_0 = arith.constant 0 : i32
    %c0_i32_1 = arith.constant 0 : i32
    return %arg0, %c0_i32, %c0_i32_0 : i32, i32, i32
  }
  func.func @transform_2(%arg0: i32) -> (i32, i32, i32) {
    %c0_i32 = arith.constant 0 : i32
    %c0_i32_0 = arith.constant 0 : i32
    %c0_i32_1 = arith.constant 0 : i32
    %c0_i32_2 = arith.constant 0 : i32
    return %c0_i32, %c0_i32_0, %c0_i32_1 : i32, i32, i32
  }
  func.func @transform_3(%arg0: i32) -> (i32, i32, i32) {
    %c0_i32 = arith.constant 0 : i32
    %c0_i32_0 = arith.constant 0 : i32
    %c0_i32_1 = arith.constant 0 : i32
    %c0_i32_2 = arith.constant 0 : i32
    return %c0_i32, %c0_i32_0, %c0_i32_1 : i32, i32, i32
  }
  func.func @transform_4(%arg0: i32) -> (i32, i32) {
    %c0_i32 = arith.constant 0 : i32
    %c0_i32_0 = arith.constant 0 : i32
    %c0_i32_1 = arith.constant 0 : i32
    return %c0_i32, %c0_i32_0 : i32, i32
  }
  func.func @transform_5(%arg0: i32) -> (i32, i32) {
    %c0_i32 = arith.constant 0 : i32
    %c0_i32_0 = arith.constant 0 : i32
    %c0_i32_1 = arith.constant 0 : i32
    return %c0_i32, %c0_i32_0 : i32, i32
  }
  func.func @transform_6(%arg0: i32) -> (i32, i32, i32) {
    %c0_i32 = arith.constant 0 : i32
    %c0_i32_0 = arith.constant 0 : i32
    %c0_i32_1 = arith.constant 0 : i32
    return %arg0, %c0_i32, %c0_i32_0 : i32, i32, i32
  }
}

</mosaic_0001>

<llo_original>
// kernel: tpu_custom_call.1
$region0: #{tpu_custom_call.1}
  #allocation0 [shape = 'u32[]', space=smem, size = 0x4, offset = 0x4, fixed_abs, tag = 'smem constant byte address 0x4 - core index']
  #allocation1 [shape = 'u32[144,128]{1,0:T(1,128)}', space=vmem, size = 0x12000, scoped, tag = 'internal scratch']
  %s0 = inlined_call_operand.vmem [shape: f32[4,8,16], index: 0, kind: input, shape index: {}]
  %s1 = inlined_call_operand.vmem [shape: f32[4,8,8], index: 1, kind: input, shape index: {}]
  %s2 = inlined_call_operand.vmem [shape: f32[3,16,8], index: 2, kind: input, shape index: {}]
  %s3 = inlined_call_operand.vmem [shape: f32[3,24,8], index: 3, kind: input, shape index: {}]
  %s4 = inlined_call_operand.vmem [shape: f32[24,8], index: 4, kind: input, shape index: {}]
  %s5 = inlined_call_operand.vmem [shape: f32[1,8], index: 5, kind: input, shape index: {}]
  %s6 = inlined_call_operand.hbm [shape: f32[4,8,8], index: 6, kind: output, shape index: {}]
  %s7 = sld [smem:[#allocation0]]
  $region57: #{tpu_custom_call.1} parent=0
    _
  %s9 = ssub.s32 1, %s7
  %s10 = scalar_select 0, %s9, %s7
  $region1: #{tpu_custom_call.1} parent=0
    #allocation2 [shape = 'u8[8192]{0}', space=vmem, size = 0x2000, scoped, tag = 'output window, operand 0']
    #allocation3 [shape = 's32[2]{0}', space=sflag, size = 0x8, scoped, tag = 'scoped memory for tpu_custom_call.1']
    %11 = vsyncpa [#allocation3], 0
    %s12 = scalar_lea.sflag [#allocation3], 1
    %13 = vsyncpa %s12, 0
    loop: start=0, step=1, limit=6
    $region2: #{tpu_custom_call.1} parent=1 // loop_pre_header
      _
    $region3: #{tpu_custom_call.1} parent=1 // loop_header
      %s15 = sphi 0, %s19
      %p16 = scmp.ge.s32.totalorder %s15, 6
      %s25 = sphi 0, %s27
      %s28 = sphi 0, %s25
      %s29 = sphi 0, %s28
      %s45 = sphi 0, %s29
      %s51 = sphi 0, %s53
      %s54 = sphi 0, %s51
      %s55 = sphi 0, %s54
      %s71 = sphi 0, %s55
      %s75 = sphi 0, %s75
      %s77 = sphi 0, %s75
      %s78 = sphi 0, %s77
      %s92 = sphi 0, %s78
      %s96 = sphi 0, %s96
      %s98 = sphi 0, %s96
      %s99 = sphi 0, %s98
      %s113 = sphi 0, %s99
      %s117 = sphi 0, %s117
      %s119 = sphi 0, %s117
      %s120 = sphi 0, %s119
      %s134 = sphi 0, %s120
      %s138 = sphi 0, %s138
      %s140 = sphi 0, %s138
      %s141 = sphi 0, %s140
      %s155 = sphi 0, %s141
      %s161 = sphi 0, %s163
      %s164 = sphi 0, %s161
      %s165 = sphi 0, %s164
      %s181 = sphi 0, %s165
    $region4: #{tpu_custom_call.1} parent=1 // loop_header_branch
      %18 = sbr.rel (%p16) target = $region8
    $region5: #{tpu_custom_call.1} parent=1 // loop_body
      %s20 = ssub.s32 %s15, 1
      %s21 = ssub.s32 %s15, 2
      %s22 = sadd.s32 %s15, 1
      %s23 = ssub.s32 %s15, %s22
      %p24 = scmp.eq.s32.totalorder %s23, 0
      %s26 = sadd.s32 %s25, 1
      %s27 = scalar_select %p24, %s25, %s26
      %p30 = pneg %p24
      %p31 = scmp.eq.s32.totalorder %s15, 3
      %p32 = por %p30, %p31
      %p33 = scmp.ne.s32.totalorder %s25, %s28
      %p34 = scmp.eq.s32.totalorder %s15, 0
      %p35 = por %p33, %p34
      %p36 = scmp.ne.s32.totalorder %s25, %s28
      %p37 = scmp.eq.s32.totalorder %s20, 3
      %p38 = por %p36, %p37
      %p39 = scmp.ne.s32.totalorder %s28, %s29
      %p40 = scmp.eq.s32.totalorder %s20, 0
      %p41 = por %p39, %p40
      %p42 = scmp.ne.s32.totalorder %s28, %s29
      %p43 = scmp.eq.s32.totalorder %s21, 3
      %p44 = por %p42, %p43
      %p46 = scmp.ne.s32.totalorder %s29, %s45
      %p47 = scmp.eq.s32.totalorder %s21, 0
      %p48 = por %p46, %p47
      %s49 = ssub.s32 %s15, %s22
      %p50 = scmp.eq.s32.totalorder %s49, 0
      %s52 = sadd.s32 %s51, 1
      %s53 = scalar_select %p50, %s51, %s52
      %p56 = pneg %p50
      %p57 = scmp.eq.s32.totalorder %s15, 3
      %p58 = por %p56, %p57
      %p59 = scmp.ne.s32.totalorder %s51, %s54
      %p60 = scmp.eq.s32.totalorder %s15, 0
      %p61 = por %p59, %p60
      %p62 = scmp.ne.s32.totalorder %s51, %s54
      %p63 = scmp.eq.s32.totalorder %s20, 3
      %p64 = por %p62, %p63
      %p65 = scmp.ne.s32.totalorder %s54, %s55
      %p66 = scmp.eq.s32.totalorder %s20, 0
      %p67 = por %p65, %p66
      %p68 = scmp.ne.s32.totalorder %s54, %s55
      %p69 = scmp.eq.s32.totalorder %s21, 3
      %p70 = por %p68, %p69
      %p72 = scmp.ne.s32.totalorder %s55, %s71
      %p73 = scmp.eq.s32.totalorder %s21, 0
      %p74 = por %p72, %p73
      %s76 = sadd.s32 %s75, 1
      %p79 = scmp.eq.s32.totalorder %s15, 3
      %p80 = scmp.ne.s32.totalorder %s75, %s77
      %p81 = scmp.eq.s32.totalorder %s15, 0
      %p82 = por %p80, %p81
      %p83 = scmp.ne.s32.totalorder %s75, %s77
      %p84 = scmp.eq.s32.totalorder %s20, 3
      %p85 = por %p83, %p84
      %p86 = scmp.ne.s32.totalorder %s77, %s78
      %p87 = scmp.eq.s32.totalorder %s20, 0
      %p88 = por %p86, %p87
      %p89 = scmp.ne.s32.totalorder %s77, %s78
      %p90 = scmp.eq.s32.totalorder %s21, 3
      %p91 = por %p89, %p90
      %p93 = scmp.ne.s32.totalorder %s78, %s92
      %p94 = scmp.eq.s32.totalorder %s21, 0
      %p95 = por %p93, %p94
      %s97 = sadd.s32 %s96, 1
      %p100 = scmp.eq.s32.totalorder %s15, 3
      %p101 = scmp.ne.s32.totalorder %s96, %s98
      %p102 = scmp.eq.s32.totalorder %s15, 0
      %p103 = por %p101, %p102
      %p104 = scmp.ne.s32.totalorder %s96, %s98
      %p105 = scmp.eq.s32.totalorder %s20, 3
      %p106 = por %p104, %p105
      %p107 = scmp.ne.s32.totalorder %s98, %s99
      %p108 = scmp.eq.s32.totalorder %s20, 0
      %p109 = por %p107, %p108
      %p110 = scmp.ne.s32.totalorder %s98, %s99
      %p111 = scmp.eq.s32.totalorder %s21, 3
      %p112 = por %p110, %p111
      %p114 = scmp.ne.s32.totalorder %s99, %s113
      %p115 = scmp.eq.s32.totalorder %s21, 0
      %p116 = por %p114, %p115
      %s118 = sadd.s32 %s117, 1
      %p121 = scmp.eq.s32.totalorder %s15, 3
      %p122 = scmp.ne.s32.totalorder %s117, %s119
      %p123 = scmp.eq.s32.totalorder %s15, 0
      %p124 = por %p122, %p123
      %p125 = scmp.ne.s32.totalorder %s117, %s119
      %p126 = scmp.eq.s32.totalorder %s20, 3
      %p127 = por %p125, %p126
      %p128 = scmp.ne.s32.totalorder %s119, %s120
      %p129 = scmp.eq.s32.totalorder %s20, 0
      %p130 = por %p128, %p129
      %p131 = scmp.ne.s32.totalorder %s119, %s120
      %p132 = scmp.eq.s32.totalorder %s21, 3
      %p133 = por %p131, %p132
      %p135 = scmp.ne.s32.totalorder %s120, %s134
      %p136 = scmp.eq.s32.totalorder %s21, 0
      %p137 = por %p135, %p136
      %s139 = sadd.s32 %s138, 1
      %p142 = scmp.eq.s32.totalorder %s15, 3
      %p143 = scmp.ne.s32.totalorder %s138, %s140
      %p144 = scmp.eq.s32.totalorder %s15, 0
      %p145 = por %p143, %p144
      %p146 = scmp.ne.s32.totalorder %s138, %s140
      %p147 = scmp.eq.s32.totalorder %s20, 3
      %p148 = por %p146, %p147
      %p149 = scmp.ne.s32.totalorder %s140, %s141
      %p150 = scmp.eq.s32.totalorder %s20, 0
      %p151 = por %p149, %p150
      %p152 = scmp.ne.s32.totalorder %s140, %s141
      %p153 = scmp.eq.s32.totalorder %s21, 3
      %p154 = por %p152, %p153
      %p156 = scmp.ne.s32.totalorder %s141, %s155
      %p157 = scmp.eq.s32.totalorder %s21, 0
      %p158 = por %p156, %p157
      %s159 = ssub.s32 %s15, %s22
      %p160 = scmp.eq.s32.totalorder %s159, 0
      %s162 = sadd.s32 %s161, 1
      %s163 = scalar_select %p160, %s161, %s162
      %p166 = pneg %p160
      %p167 = scmp.eq.s32.totalorder %s15, 3
      %p168 = por %p166, %p167
      %p169 = scmp.ne.s32.totalorder %s161, %s164
      %p170 = scmp.eq.s32.totalorder %s15, 0
      %p171 = por %p169, %p170
      %p172 = scmp.ne.s32.totalorder %s161, %s164
      %p173 = scmp.eq.s32.totalorder %s20, 3
      %p174 = por %p172, %p173
      %p175 = scmp.ne.s32.totalorder %s164, %s165
      %p176 = scmp.eq.s32.totalorder %s20, 0
      %p177 = por %p175, %p176
      %p178 = scmp.ne.s32.totalorder %s164, %s165
      %p179 = scmp.eq.s32.totalorder %s21, 3
      %p180 = por %p178, %p179
      %p182 = scmp.ne.s32.totalorder %s165, %s181
      %p183 = scmp.eq.s32.totalorder %s21, 0
      %p184 = por %p182, %p183
      %p185 = scmp.le.s32.totalorder 1, %s15
      %p186 = scmp.lt.s32.totalorder %s15, 5
      %p187 = pnand %p185, %p186
      %p188 = pneg %p187
      // Predicated region
      $region9: #{tpu_custom_call.1} parent=5 // pred_check
        _
      $region10: #{tpu_custom_call.1} parent=5 // pred_check_branch
        %190 = sbr.rel (%p187) target = $region12
      $region11: #{tpu_custom_call.1} parent=5 // pred_region
        %s191 = ssub.s32 %s15, 1
        // Predicated region
        $region13: #{tpu_custom_call.1} parent=11 // pred_check
          %p192 = pneg %p88
        $region14: #{tpu_custom_call.1} parent=11 // pred_check_branch
          %194 = sbr.rel (%p192) target = $region16
        $region15: #{tpu_custom_call.1} parent=11 // pred_region
          _
        $region16: #{tpu_custom_call.1} parent=11 // pred_fallthru
          _
        // Predicated region
        $region17: #{tpu_custom_call.1} parent=11 // pred_check
          %p195 = pneg %p109
        $region18: #{tpu_custom_call.1} parent=11 // pred_check_branch
          %197 = sbr.rel (%p195) target = $region20
        $region19: #{tpu_custom_call.1} parent=11 // pred_region
          _
        $region20: #{tpu_custom_call.1} parent=11 // pred_fallthru
          _
        // Predicated region
        $region21: #{tpu_custom_call.1} parent=11 // pred_check
          %p198 = pneg %p130
        $region22: #{tpu_custom_call.1} parent=11 // pred_check_branch
          %200 = sbr.rel (%p198) target = $region24
        $region23: #{tpu_custom_call.1} parent=11 // pred_region
          _
        $region24: #{tpu_custom_call.1} parent=11 // pred_fallthru
          _
        // Predicated region
        $region25: #{tpu_custom_call.1} parent=11 // pred_check
          %p201 = pneg %p151
        $region26: #{tpu_custom_call.1} parent=11 // pred_check_branch
          %203 = sbr.rel (%p201) target = $region28
        $region27: #{tpu_custom_call.1} parent=11 // pred_region
          _
        $region28: #{tpu_custom_call.1} parent=11 // pred_fallthru
          _
      $region12: #{tpu_custom_call.1} parent=5 // pred_fallthru
        _
      %p204 = scmp.lt.s32.totalorder %s15, 4
      // Predicated region
      $region29: #{tpu_custom_call.1} parent=5 // pred_check
        %p205 = pneg %p204
      $region30: #{tpu_custom_call.1} parent=5 // pred_check_branch
        %207 = sbr.rel (%p205) target = $region32
      $region31: #{tpu_custom_call.1} parent=5 // pred_region
        // Predicated region
        $region33: #{tpu_custom_call.1} parent=31 // pred_check
          %p208 = pneg %p35
        $region34: #{tpu_custom_call.1} parent=31 // pred_check_branch
          %210 = sbr.rel (%p208) target = $region36
        $region35: #{tpu_custom_call.1} parent=31 // pred_region
          %p211 = scmp.lt.s32.totalorder %s15, 3
          %s212 = scalar_select %p211, %s15, 3
          %s213 = smul.addr %s212, 8
          %s214 = scalar_lea.vmem %s0, %s213
        $region36: #{tpu_custom_call.1} parent=31 // pred_fallthru
          _
        // Predicated region
        $region37: #{tpu_custom_call.1} parent=31 // pred_check
          %p215 = pneg %p61
        $region38: #{tpu_custom_call.1} parent=31 // pred_check_branch
          %217 = sbr.rel (%p215) target = $region40
        $region39: #{tpu_custom_call.1} parent=31 // pred_region
          %p218 = scmp.lt.s32.totalorder %s15, 3
          %s219 = scalar_select %p218, %s15, 3
          %s220 = smul.addr %s219, 8
          %s221 = scalar_lea.vmem %s1, %s220
        $region40: #{tpu_custom_call.1} parent=31 // pred_fallthru
          _
      $region32: #{tpu_custom_call.1} parent=5 // pred_fallthru
        _
      %p222 = scmp.le.s32.totalorder 1, %s15
      %p223 = scmp.lt.s32.totalorder %s15, 5
      %p224 = pnand %p222, %p223
      %p225 = pneg %p224
      // Predicated region
      $region41: #{tpu_custom_call.1} parent=5 // pred_check
        _
      $region42: #{tpu_custom_call.1} parent=5 // pred_check_branch
        %227 = sbr.rel (%p224) target = $region44
      $region43: #{tpu_custom_call.1} parent=5 // pred_region
        %s228 = ssub.s32 %s15, 1
        %p229 = scmp.lt.s32.totalorder %s20, 3
        %s230 = scalar_select %p229, %s20, 3
        %s231 = smul.addr %s230, 8
        %s232 = scalar_lea.vmem %s0, %s231
        %p233 = pneg %p41
        %p234 = pneg %p38
        %p235 = scmp.lt.s32.totalorder %s20, 3
        %s236 = scalar_select %p235, %s20, 3
        %s237 = smul.addr %s236, 8
        %s238 = scalar_lea.vmem %s1, %s237
        %p239 = pneg %p67
        %p240 = pneg %p64
        %p241 = pneg %p88
        %p242 = pneg %p85
        %p243 = pneg %p109
        %p244 = pneg %p106
        %p245 = pneg %p130
        %p246 = pneg %p127
        %p247 = pneg %p151
        %p248 = pneg %p148
        %p249 = pneg %p177
        %p250 = pneg %p174
        %s251 = sand.u32 %s164, 1
        %s252 = scalar_lea.sflag [#allocation3], %s251
        %s253 = sand.u32 %s164, 1
        %s254 = smul.addr %s253, 8
        %s255 = scalar_lea.vmem [#allocation2], %s254
        %p256 = scmp.lt.s32.totalorder %s20, 3
        %s257 = scalar_select %p256, %s20, 3
        %s258 = smul.addr %s257, 8
        %s259 = scalar_lea.vmem %s0, %s258
        %p260 = scmp.lt.s32.totalorder %s20, 3
        %s261 = scalar_select %p260, %s20, 3
        %s262 = smul.addr %s261, 8
        %s263 = scalar_lea.vmem %s1, %s262
        %v264 = vld [vmem:[%s263] sm:$0xff]
        %v265 = vld [vmem:[%s259] sm:$0xff]
        %v266 = vld [vmem:[%s2] sm:$0xff]
        %v267 = vld [vmem:[%s2 + $0x8] sm:$0xff]
        %v268 = vld [vmem:[%s2 + $0x10] sm:$0xff]
        %v269 = vld [vmem:[%s2 + $0x18] sm:$0xff]
        %v270 = vld [vmem:[%s2 + $0x20] sm:$0xff]
        %v271 = vld [vmem:[%s2 + $0x28] sm:$0xff]
        %vm272 = vcmask 130048
        %v274 = vsel %vm272, %v265, 0
        %276 = vmatprep.subr.mxu0 0.0
        %277 = vmatpush1.msra.mxu0 %v266
        %278 = vmatprep.subr.mxu0 0.0
        %279 = vmatpush1.msra.mxu0 %v267
        %280 = vmatprep.subr.mxu0 0.0
        %281 = vmatpush1.msra.mxu0 0.0
        %282 = vmatprep.subr.mxu0 0.0
        %283 = vmatpush1.msra.mxu0 0.0
        %284 = vmatprep.subr.mxu0 0.0
        %285 = vmatpush1.msra.mxu0 0.0
        %286 = vmatprep.subr.mxu0 0.0
        %287 = vmatpush1.msra.mxu0 0.0
        %288 = vmatprep.subr.mxu0 0.0
        %289 = vmatpush1.msra.mxu0 0.0
        %290 = vmatprep.subr.mxu0 0.0
        %291 = vmatpush1.msra.mxu0 0.0
        %292 = vmatprep.subr.mxu0 0.0
        %293 = vmatpush1.msra.mxu0 0.0
        %294 = vmatprep.subr.mxu0 0.0
        %295 = vmatpush1.msra.mxu0 0.0
        %296 = vmatprep.subr.mxu0 0.0
        %297 = vmatpush1.msra.mxu0 0.0
        %298 = vmatprep.subr.mxu0 0.0
        %299 = vmatpush1.msra.mxu0 0.0
        %300 = vmatprep.subr.mxu0 0.0
        %301 = vmatpush1.msra.mxu0 0.0
        %302 = vmatprep.subr.mxu0 0.0
        %303 = vmatpush1.msra.mxu0 0.0
        %304 = vmatprep.subr.mxu0 0.0
        %305 = vmatpush1.msra.mxu0 0.0
        %306 = vmatprep.subr.mxu0 0.0
        %307 = vmatpush1.msra.mxu0 0.0
        %308 = vmatprep.subr.mxu0 0.0
        %309 = vmatpush1.msra.mxu0 0.0
        %310 = vmatprep.subr.mxu0 0.0
        %311 = vmatpush1.msra.mxu0 0.0
        %312 = vmatprep.subr.mxu0 0.0
        %313 = vmatpush1.msra.mxu0 0.0
        %314 = vmatprep.subr.mxu0 0.0
        %315 = vmatpush1.msra.mxu0 0.0
        %316 = vmatprep.subr.mxu0 0.0
        %317 = vmatpush1.msra.mxu0 0.0
        %318 = vmatprep.subr.mxu0 0.0
        %319 = vmatpush1.msra.mxu0 0.0
        %320 = vmatprep.subr.mxu0 0.0
        %321 = vmatpush1.msra.mxu0 0.0
        %322 = vmatprep.subr.mxu0 0.0
        %323 = vmatpush1.msra.mxu0 0.0
        %324 = vmatprep.subr.mxu0 0.0
        %325 = vmatpush1.msra.mxu0 0.0
        %326 = vmatprep.subr.mxu0 0.0
        %327 = vmatpush1.msra.mxu0 0.0
        %328 = vmatprep.subr.mxu0 0.0
        %329 = vmatpush1.msra.mxu0 0.0
        %330 = vmatprep.subr.mxu0 0.0
        %331 = vmatpush1.msra.mxu0 0.0
        %332 = vmatprep.subr.mxu0 0.0
        %333 = vmatpush1.msra.mxu0 0.0
        %334 = vmatprep.subr.mxu0 0.0
        %335 = vmatpush1.msra.mxu0 0.0
        %336 = vmatprep.subr.mxu0 0.0
        %337 = vmatpush1.msra.mxu0 0.0
        %338 = vmatprep.subr.mxu0 0.0
        %339 = vmatpush1.msra.mxu0 0.0
        %340 = vmatprep.mubr.f32.mxu0 0.0
        %341 = vmatmul.mubr.f32.gmra.mrb[0].mxu0 %v274
        %v342 = vpop.f32.mrb[0].mxu0
        %v343 = vadd.f32 0.0, %v342
        %v344 = vpop.f32.mrb[0].mxu0
        %345 = vdwg.mxu0
        %346 = vmatprep.subr.mxu0 0.0
        %347 = vmatpush1.msra.mxu0 %v268
        %348 = vmatprep.subr.mxu0 0.0
        %349 = vmatpush1.msra.mxu0 %v269
        %350 = vmatprep.subr.mxu0 0.0
        %351 = vmatpush1.msra.mxu0 0.0
        %352 = vmatprep.subr.mxu0 0.0
        %353 = vmatpush1.msra.mxu0 0.0
        %354 = vmatprep.subr.mxu0 0.0
        %355 = vmatpush1.msra.mxu0 0.0
        %356 = vmatprep.subr.mxu0 0.0
        %357 = vmatpush1.msra.mxu0 0.0
        %358 = vmatprep.subr.mxu0 0.0
        %359 = vmatpush1.msra.mxu0 0.0
        %360 = vmatprep.subr.mxu0 0.0
        %361 = vmatpush1.msra.mxu0 0.0
        %362 = vmatprep.subr.mxu0 0.0
        %363 = vmatpush1.msra.mxu0 0.0
        %364 = vmatprep.subr.mxu0 0.0
        %365 = vmatpush1.msra.mxu0 0.0
        %366 = vmatprep.subr.mxu0 0.0
        %367 = vmatpush1.msra.mxu0 0.0
        %368 = vmatprep.subr.mxu0 0.0
        %369 = vmatpush1.msra.mxu0 0.0
        %370 = vmatprep.subr.mxu0 0.0
        %371 = vmatpush1.msra.mxu0 0.0
        %372 = vmatprep.subr.mxu0 0.0
        %373 = vmatpush1.msra.mxu0 0.0
        %374 = vmatprep.subr.mxu0 0.0
        %375 = vmatpush1.msra.mxu0 0.0
        %376 = vmatprep.subr.mxu0 0.0
        %377 = vmatpush1.msra.mxu0 0.0
        %378 = vmatprep.subr.mxu0 0.0
        %379 = vmatpush1.msra.mxu0 0.0
        %380 = vmatprep.subr.mxu0 0.0
        %381 = vmatpush1.msra.mxu0 0.0
        %382 = vmatprep.subr.mxu0 0.0
        %383 = vmatpush1.msra.mxu0 0.0
        %384 = vmatprep.subr.mxu0 0.0
        %385 = vmatpush1.msra.mxu0 0.0
        %386 = vmatprep.subr.mxu0 0.0
        %387 = vmatpush1.msra.mxu0 0.0
        %388 = vmatprep.subr.mxu0 0.0
        %389 = vmatpush1.msra.mxu0 0.0
        %390 = vmatprep.subr.mxu0 0.0
        %391 = vmatpush1.msra.mxu0 0.0
        %392 = vmatprep.subr.mxu0 0.0
        %393 = vmatpush1.msra.mxu0 0.0
        %394 = vmatprep.subr.mxu0 0.0
        %395 = vmatpush1.msra.mxu0 0.0
        %396 = vmatprep.subr.mxu0 0.0
        %397 = vmatpush1.msra.mxu0 0.0
        %398 = vmatprep.subr.mxu0 0.0
        %399 = vmatpush1.msra.mxu0 0.0
        %400 = vmatprep.subr.mxu0 0.0
        %401 = vmatpush1.msra.mxu0 0.0
        %402 = vmatprep.subr.mxu0 0.0
        %403 = vmatpush1.msra.mxu0 0.0
        %404 = vmatprep.subr.mxu0 0.0
        %405 = vmatpush1.msra.mxu0 0.0
        %406 = vmatprep.subr.mxu0 0.0
        %407 = vmatpush1.msra.mxu0 0.0
        %408 = vmatprep.subr.mxu0 0.0
        %409 = vmatpush1.msra.mxu0 0.0
        %410 = vmatprep.mubr.f32.mxu0 0.0
        %411 = vmatmul.mubr.f32.gmra.mrb[0].mxu0 %v274
        %v412 = vpop.f32.mrb[0].mxu0
        %v413 = vadd.f32 0.0, %v412
        %v414 = vpop.f32.mrb[0].mxu0
        %415 = vdwg.mxu0
        %416 = vmatprep.subr.mxu0 0.0
        %417 = vmatpush1.msra.mxu0 %v270
        %418 = vmatprep.subr.mxu0 0.0
        %419 = vmatpush1.msra.mxu0 %v271
        %420 = vmatprep.subr.mxu0 0.0
        %421 = vmatpush1.msra.mxu0 0.0
        %422 = vmatprep.subr.mxu0 0.0
        %423 = vmatpush1.msra.mxu0 0.0
        %424 = vmatprep.subr.mxu0 0.0
        %425 = vmatpush1.msra.mxu0 0.0
        %426 = vmatprep.subr.mxu0 0.0
        %427 = vmatpush1.msra.mxu0 0.0
        %428 = vmatprep.subr.mxu0 0.0
        %429 = vmatpush1.msra.mxu0 0.0
        %430 = vmatprep.subr.mxu0 0.0
        %431 = vmatpush1.msra.mxu0 0.0
        %432 = vmatprep.subr.mxu0 0.0
        %433 = vmatpush1.msra.mxu0 0.0
        %434 = vmatprep.subr.mxu0 0.0
        %435 = vmatpush1.msra.mxu0 0.0
        %436 = vmatprep.subr.mxu0 0.0
        %437 = vmatpush1.msra.mxu0 0.0
        %438 = vmatprep.subr.mxu0 0.0
        %439 = vmatpush1.msra.mxu0 0.0
        %440 = vmatprep.subr.mxu0 0.0
        %441 = vmatpush1.msra.mxu0 0.0
        %442 = vmatprep.subr.mxu0 0.0
        %443 = vmatpush1.msra.mxu0 0.0
        %444 = vmatprep.subr.mxu0 0.0
        %445 = vmatpush1.msra.mxu0 0.0
        %446 = vmatprep.subr.mxu0 0.0
        %447 = vmatpush1.msra.mxu0 0.0
        %448 = vmatprep.subr.mxu0 0.0
        %449 = vmatpush1.msra.mxu0 0.0
        %450 = vmatprep.subr.mxu0 0.0
        %451 = vmatpush1.msra.mxu0 0.0
        %452 = vmatprep.subr.mxu0 0.0
        %453 = vmatpush1.msra.mxu0 0.0
        %454 = vmatprep.subr.mxu0 0.0
        %455 = vmatpush1.msra.mxu0 0.0
        %456 = vmatprep.subr.mxu0 0.0
        %457 = vmatpush1.msra.mxu0 0.0
        %458 = vmatprep.subr.mxu0 0.0
        %459 = vmatpush1.msra.mxu0 0.0
        %460 = vmatprep.subr.mxu0 0.0
        %461 = vmatpush1.msra.mxu0 0.0
        %462 = vmatprep.subr.mxu0 0.0
        %463 = vmatpush1.msra.mxu0 0.0
        %464 = vmatprep.subr.mxu0 0.0
        %465 = vmatpush1.msra.mxu0 0.0
        %466 = vmatprep.subr.mxu0 0.0
        %467 = vmatpush1.msra.mxu0 0.0
        %468 = vmatprep.subr.mxu0 0.0
        %469 = vmatpush1.msra.mxu0 0.0
        %470 = vmatprep.subr.mxu0 0.0
        %471 = vmatpush1.msra.mxu0 0.0
        %472 = vmatprep.subr.mxu0 0.0
        %473 = vmatpush1.msra.mxu0 0.0
        %474 = vmatprep.subr.mxu0 0.0
        %475 = vmatpush1.msra.mxu0 0.0
        %476 = vmatprep.subr.mxu0 0.0
        %477 = vmatpush1.msra.mxu0 0.0
        %478 = vmatprep.subr.mxu0 0.0
        %479 = vmatpush1.msra.mxu0 0.0
        %480 = vmatprep.mubr.f32.mxu0 0.0
        %481 = vmatmul.mubr.f32.gmra.mrb[0].mxu0 %v274
        %v482 = vpop.f32.mrb[0].mxu0
        %v483 = vadd.f32 0.0, %v482
        %v484 = vpop.f32.mrb[0].mxu0
        %485 = vdwg.mxu0
        %v486 = vmul.f32 %v343, 0.35355338
        %v487 = vmul.f32 %v413, 0.35355338
        %v488 = vmul.f32 %v483, 0.35355338
        %vm489 = vcmask 64512
        %v491 = vsel %vm489, %v486, 0
        %v494 = vsel %vm489, %v343, 0
        %496 = vmatprep.subr.mxu0 0.0
        %497 = vmatpush1.xpose.msra.mxu0 %v494
        %498 = vmatprep.subr.mxu0 0.0
        %499 = vmatpush1.xpose.msra.mxu0 0.0
        %500 = vmatprep.subr.mxu0 0.0
        %501 = vmatpush1.xpose.msra.mxu0 0.0
        %502 = vmatprep.subr.mxu0 0.0
        %503 = vmatpush1.xpose.msra.mxu0 0.0
        %504 = vmatprep.subr.mxu0 0.0
        %505 = vmatpush1.xpose.msra.mxu0 0.0
        %506 = vmatprep.subr.mxu0 0.0
        %507 = vmatpush1.xpose.msra.mxu0 0.0
        %508 = vmatprep.subr.mxu0 0.0
        %509 = vmatpush1.xpose.msra.mxu0 0.0
        %510 = vmatprep.subr.mxu0 0.0
        %511 = vmatpush1.xpose.msra.mxu0 0.0
        %512 = vmatprep.subr.mxu0 0.0
        %513 = vmatpush1.xpose.msra.mxu0 0.0
        %514 = vmatprep.subr.mxu0 0.0
        %515 = vmatpush1.xpose.msra.mxu0 0.0
        %516 = vmatprep.subr.mxu0 0.0
        %517 = vmatpush1.xpose.msra.mxu0 0.0
        %518 = vmatprep.subr.mxu0 0.0
        %519 = vmatpush1.xpose.msra.mxu0 0.0
        %520 = vmatprep.subr.mxu0 0.0
        %521 = vmatpush1.xpose.msra.mxu0 0.0
        %522 = vmatprep.subr.mxu0 0.0
        %523 = vmatpush1.xpose.msra.mxu0 0.0
        %524 = vmatprep.subr.mxu0 0.0
        %525 = vmatpush1.xpose.msra.mxu0 0.0
        %526 = vmatprep.subr.mxu0 0.0
        %527 = vmatpush1.xpose.msra.mxu0 0.0
        %528 = vmatprep.subr.mxu0 0.0
        %529 = vmatpush1.xpose.msra.mxu0 0.0
        %530 = vmatprep.subr.mxu0 0.0
        %531 = vmatpush1.xpose.msra.mxu0 0.0
        %532 = vmatprep.subr.mxu0 0.0
        %533 = vmatpush1.xpose.msra.mxu0 0.0
        %534 = vmatprep.subr.mxu0 0.0
        %535 = vmatpush1.xpose.msra.mxu0 0.0
        %536 = vmatprep.subr.mxu0 0.0
        %537 = vmatpush1.xpose.msra.mxu0 0.0
        %538 = vmatprep.subr.mxu0 0.0
        %539 = vmatpush1.xpose.msra.mxu0 0.0
        %540 = vmatprep.subr.mxu0 0.0
        %541 = vmatpush1.xpose.msra.mxu0 0.0
        %542 = vmatprep.subr.mxu0 0.0
        %543 = vmatpush1.xpose.msra.mxu0 0.0
        %544 = vmatprep.subr.mxu0 0.0
        %545 = vmatpush1.xpose.msra.mxu0 0.0
        %546 = vmatprep.subr.mxu0 0.0
        %547 = vmatpush1.xpose.msra.mxu0 0.0
        %548 = vmatprep.subr.mxu0 0.0
        %549 = vmatpush1.xpose.msra.mxu0 0.0
        %550 = vmatprep.subr.mxu0 0.0
        %551 = vmatpush1.xpose.msra.mxu0 0.0
        %552 = vmatprep.subr.mxu0 0.0
        %553 = vmatpush1.xpose.msra.mxu0 0.0
        %554 = vmatprep.subr.mxu0 0.0
        %555 = vmatpush1.xpose.msra.mxu0 0.0
        %556 = vmatprep.subr.mxu0 0.0
        %557 = vmatpush1.xpose.msra.mxu0 0.0
        %558 = vmatprep.subr.mxu0 0.0
        %559 = vmatpush1.xpose.msra.mxu0 0.0
        %560 = vmatprep.mubr.f32.mxu0 0.0
        %561 = vmatmul.mubr.f32.gmra.mrb[0].mxu0 %v491
        %v562 = vpop.f32.mrb[0].mxu0
        %v563 = vadd.f32 %v264, %v562
        %v564 = vpop.f32.mrb[0].mxu0
        %565 = vdwg.mxu0
        %v567 = vsel %vm489, %v487, 0
        %v570 = vsel %vm489, %v413, 0
        %572 = vmatprep.subr.mxu0 0.0
        %573 = vmatpush1.xpose.msra.mxu0 %v570
        %574 = vmatprep.subr.mxu0 0.0
        %575 = vmatpush1.xpose.msra.mxu0 0.0
        %576 = vmatprep.subr.mxu0 0.0
        %577 = vmatpush1.xpose.msra.mxu0 0.0
        %578 = vmatprep.subr.mxu0 0.0
        %579 = vmatpush1.xpose.msra.mxu0 0.0
        %580 = vmatprep.subr.mxu0 0.0
        %581 = vmatpush1.xpose.msra.mxu0 0.0
        %582 = vmatprep.subr.mxu0 0.0
        %583 = vmatpush1.xpose.msra.mxu0 0.0
        %584 = vmatprep.subr.mxu0 0.0
        %585 = vmatpush1.xpose.msra.mxu0 0.0
        %586 = vmatprep.subr.mxu0 0.0
        %587 = vmatpush1.xpose.msra.mxu0 0.0
        %588 = vmatprep.subr.mxu0 0.0
        %589 = vmatpush1.xpose.msra.mxu0 0.0
        %590 = vmatprep.subr.mxu0 0.0
        %591 = vmatpush1.xpose.msra.mxu0 0.0
        %592 = vmatprep.subr.mxu0 0.0
        %593 = vmatpush1.xpose.msra.mxu0 0.0
        %594 = vmatprep.subr.mxu0 0.0
        %595 = vmatpush1.xpose.msra.mxu0 0.0
        %596 = vmatprep.subr.mxu0 0.0
        %597 = vmatpush1.xpose.msra.mxu0 0.0
        %598 = vmatprep.subr.mxu0 0.0
        %599 = vmatpush1.xpose.msra.mxu0 0.0
        %600 = vmatprep.subr.mxu0 0.0
        %601 = vmatpush1.xpose.msra.mxu0 0.0
        %602 = vmatprep.subr.mxu0 0.0
        %603 = vmatpush1.xpose.msra.mxu0 0.0
        %604 = vmatprep.subr.mxu0 0.0
        %605 = vmatpush1.xpose.msra.mxu0 0.0
        %606 = vmatprep.subr.mxu0 0.0
        %607 = vmatpush1.xpose.msra.mxu0 0.0
        %608 = vmatprep.subr.mxu0 0.0
        %609 = vmatpush1.xpose.msra.mxu0 0.0
        %610 = vmatprep.subr.mxu0 0.0
        %611 = vmatpush1.xpose.msra.mxu0 0.0
        %612 = vmatprep.subr.mxu0 0.0
        %613 = vmatpush1.xpose.msra.mxu0 0.0
        %614 = vmatprep.subr.mxu0 0.0
        %615 = vmatpush1.xpose.msra.mxu0 0.0
        %616 = vmatprep.subr.mxu0 0.0
        %617 = vmatpush1.xpose.msra.mxu0 0.0
        %618 = vmatprep.subr.mxu0 0.0
        %619 = vmatpush1.xpose.msra.mxu0 0.0
        %620 = vmatprep.subr.mxu0 0.0
        %621 = vmatpush1.xpose.msra.mxu0 0.0
        %622 = vmatprep.subr.mxu0 0.0
        %623 = vmatpush1.xpose.msra.mxu0 0.0
        %624 = vmatprep.subr.mxu0 0.0
        %625 = vmatpush1.xpose.msra.mxu0 0.0
        %626 = vmatprep.subr.mxu0 0.0
        %627 = vmatpush1.xpose.msra.mxu0 0.0
        %628 = vmatprep.subr.mxu0 0.0
        %629 = vmatpush1.xpose.msra.mxu0 0.0
        %630 = vmatprep.subr.mxu0 0.0
        %631 = vmatpush1.xpose.msra.mxu0 0.0
        %632 = vmatprep.subr.mxu0 0.0
        %633 = vmatpush1.xpose.msra.mxu0 0.0
        %634 = vmatprep.subr.mxu0 0.0
        %635 = vmatpush1.xpose.msra.mxu0 0.0
        %636 = vmatprep.mubr.f32.mxu0 0.0
        %637 = vmatmul.mubr.f32.gmra.mrb[0].mxu0 %v567
        %v638 = vpop.f32.mrb[0].mxu0
        %v639 = vadd.f32 %v264, %v638
        %v640 = vpop.f32.mrb[0].mxu0
        %641 = vdwg.mxu0
        %v643 = vsel %vm489, %v488, 0
        %v646 = vsel %vm489, %v483, 0
        %648 = vmatprep.subr.mxu0 0.0
        %649 = vmatpush1.xpose.msra.mxu0 %v646
        %650 = vmatprep.subr.mxu0 0.0
        %651 = vmatpush1.xpose.msra.mxu0 0.0
        %652 = vmatprep.subr.mxu0 0.0
        %653 = vmatpush1.xpose.msra.mxu0 0.0
        %654 = vmatprep.subr.mxu0 0.0
        %655 = vmatpush1.xpose.msra.mxu0 0.0
        %656 = vmatprep.subr.mxu0 0.0
        %657 = vmatpush1.xpose.msra.mxu0 0.0
        %658 = vmatprep.subr.mxu0 0.0
        %659 = vmatpush1.xpose.msra.mxu0 0.0
        %660 = vmatprep.subr.mxu0 0.0
        %661 = vmatpush1.xpose.msra.mxu0 0.0
        %662 = vmatprep.subr.mxu0 0.0
        %663 = vmatpush1.xpose.msra.mxu0 0.0
        %664 = vmatprep.subr.mxu0 0.0
        %665 = vmatpush1.xpose.msra.mxu0 0.0
        %666 = vmatprep.subr.mxu0 0.0
        %667 = vmatpush1.xpose.msra.mxu0 0.0
        %668 = vmatprep.subr.mxu0 0.0
        %669 = vmatpush1.xpose.msra.mxu0 0.0
        %670 = vmatprep.subr.mxu0 0.0
        %671 = vmatpush1.xpose.msra.mxu0 0.0
        %672 = vmatprep.subr.mxu0 0.0
        %673 = vmatpush1.xpose.msra.mxu0 0.0
        %674 = vmatprep.subr.mxu0 0.0
        %675 = vmatpush1.xpose.msra.mxu0 0.0
        %676 = vmatprep.subr.mxu0 0.0
        %677 = vmatpush1.xpose.msra.mxu0 0.0
        %678 = vmatprep.subr.mxu0 0.0
        %679 = vmatpush1.xpose.msra.mxu0 0.0
        %680 = vmatprep.subr.mxu0 0.0
        %681 = vmatpush1.xpose.msra.mxu0 0.0
        %682 = vmatprep.subr.mxu0 0.0
        %683 = vmatpush1.xpose.msra.mxu0 0.0
        %684 = vmatprep.subr.mxu0 0.0
        %685 = vmatpush1.xpose.msra.mxu0 0.0
        %686 = vmatprep.subr.mxu0 0.0
        %687 = vmatpush1.xpose.msra.mxu0 0.0
        %688 = vmatprep.subr.mxu0 0.0
        %689 = vmatpush1.xpose.msra.mxu0 0.0
        %690 = vmatprep.subr.mxu0 0.0
        %691 = vmatpush1.xpose.msra.mxu0 0.0
        %692 = vmatprep.subr.mxu0 0.0
        %693 = vmatpush1.xpose.msra.mxu0 0.0
        %694 = vmatprep.subr.mxu0 0.0
        %695 = vmatpush1.xpose.msra.mxu0 0.0
        %696 = vmatprep.subr.mxu0 0.0
        %697 = vmatpush1.xpose.msra.mxu0 0.0
        %698 = vmatprep.subr.mxu0 0.0
        %699 = vmatpush1.xpose.msra.mxu0 0.0
        %700 = vmatprep.subr.mxu0 0.0
        %701 = vmatpush1.xpose.msra.mxu0 0.0
        %702 = vmatprep.subr.mxu0 0.0
        %703 = vmatpush1.xpose.msra.mxu0 0.0
        %704 = vmatprep.subr.mxu0 0.0
        %705 = vmatpush1.xpose.msra.mxu0 0.0
        %706 = vmatprep.subr.mxu0 0.0
        %707 = vmatpush1.xpose.msra.mxu0 0.0
        %708 = vmatprep.subr.mxu0 0.0
        %709 = vmatpush1.xpose.msra.mxu0 0.0
        %710 = vmatprep.subr.mxu0 0.0
        %711 = vmatpush1.xpose.msra.mxu0 0.0
        %712 = vmatprep.mubr.f32.mxu0 0.0
        %713 = vmatmul.mubr.f32.gmra.mrb[0].mxu0 %v643
        %v714 = vpop.f32.mrb[0].mxu0
        %v715 = vadd.f32 %v264, %v714
        %v716 = vpop.f32.mrb[0].mxu0
        %717 = vdwg.mxu0
        %v718 = vsel %vm489, %v563, -inf
        %719 = vmax.xlane.f32.xlu0 %v718
        %v720 = vpop.xlane.xlu0 %719
        %v721 = vsel %vm489, %v639, -inf
        %722 = vmax.xlane.f32.xlu0 %v721
        %v723 = vpop.xlane.xlu0 %722
        %v724 = vsel %vm489, %v715, -inf
        %725 = vmax.xlane.f32.xlu0 %v724
        %v726 = vpop.xlane.xlu0 %725
        %v727 = vsub.f32 %v563, %v720
        %v728 = vsub.f32 %v639, %v723
        %v729 = vsub.f32 %v715, %v726
        %v730 = vmul.f32 %v727, 1.442695
        %v731 = vpow.pop %v730
        %v732 = vmul.f32 %v728, 1.442695
        %v733 = vpow.pop %v732
        %v734 = vmul.f32 %v729, 1.442695
        %v735 = vpow.pop %v734
        %v736 = vsel %vm489, %v731, 0.0
        %737 = vadd.xlane.f32.xlu0 %v736
        %v738 = vpop.xlane.xlu0 %737
        %v739 = vsel %vm489, %v733, 0.0
        %740 = vadd.xlane.f32.xlu0 %v739
        %v741 = vpop.xlane.xlu0 %740
        %v742 = vsel %vm489, %v735, 0.0
        %743 = vadd.xlane.f32.xlu0 %v742
        %v744 = vpop.xlane.xlu0 %743
        %v746 = vsel %vm489, %v731, 0
        %748 = vmatprep.subr.mxu0 0.0
        %749 = vmatpush1.msra.mxu0 %v343
        %750 = vmatprep.subr.mxu0 0.0
        %751 = vmatpush1.msra.mxu0 0.0
        %752 = vmatprep.subr.mxu0 0.0
        %753 = vmatpush1.msra.mxu0 0.0
        %754 = vmatprep.subr.mxu0 0.0
        %755 = vmatpush1.msra.mxu0 0.0
        %756 = vmatprep.subr.mxu0 0.0
        %757 = vmatpush1.msra.mxu0 0.0
        %758 = vmatprep.subr.mxu0 0.0
        %759 = vmatpush1.msra.mxu0 0.0
        %760 = vmatprep.subr.mxu0 0.0
        %761 = vmatpush1.msra.mxu0 0.0
        %762 = vmatprep.subr.mxu0 0.0
        %763 = vmatpush1.msra.mxu0 0.0
        %764 = vmatprep.subr.mxu0 0.0
        %765 = vmatpush1.msra.mxu0 0.0
        %766 = vmatprep.subr.mxu0 0.0
        %767 = vmatpush1.msra.mxu0 0.0
        %768 = vmatprep.subr.mxu0 0.0
        %769 = vmatpush1.msra.mxu0 0.0
        %770 = vmatprep.subr.mxu0 0.0
        %771 = vmatpush1.msra.mxu0 0.0
        %772 = vmatprep.subr.mxu0 0.0
        %773 = vmatpush1.msra.mxu0 0.0
        %774 = vmatprep.subr.mxu0 0.0
        %775 = vmatpush1.msra.mxu0 0.0
        %776 = vmatprep.subr.mxu0 0.0
        %777 = vmatpush1.msra.mxu0 0.0
        %778 = vmatprep.subr.mxu0 0.0
        %779 = vmatpush1.msra.mxu0 0.0
        %780 = vmatprep.subr.mxu0 0.0
        %781 = vmatpush1.msra.mxu0 0.0
        %782 = vmatprep.subr.mxu0 0.0
        %783 = vmatpush1.msra.mxu0 0.0
        %784 = vmatprep.subr.mxu0 0.0
        %785 = vmatpush1.msra.mxu0 0.0
        %786 = vmatprep.subr.mxu0 0.0
        %787 = vmatpush1.msra.mxu0 0.0
        %788 = vmatprep.subr.mxu0 0.0
        %789 = vmatpush1.msra.mxu0 0.0
        %790 = vmatprep.subr.mxu0 0.0
        %791 = vmatpush1.msra.mxu0 0.0
        %792 = vmatprep.subr.mxu0 0.0
        %793 = vmatpush1.msra.mxu0 0.0
        %794 = vmatprep.subr.mxu0 0.0
        %795 = vmatpush1.msra.mxu0 0.0
        %796 = vmatprep.subr.mxu0 0.0
        %797 = vmatpush1.msra.mxu0 0.0
        %798 = vmatprep.subr.mxu0 0.0
        %799 = vmatpush1.msra.mxu0 0.0
        %800 = vmatprep.subr.mxu0 0.0
        %801 = vmatpush1.msra.mxu0 0.0
        %802 = vmatprep.subr.mxu0 0.0
        %803 = vmatpush1.msra.mxu0 0.0
        %804 = vmatprep.subr.mxu0 0.0
        %805 = vmatpush1.msra.mxu0 0.0
        %806 = vmatprep.subr.mxu0 0.0
        %807 = vmatpush1.msra.mxu0 0.0
        %808 = vmatprep.subr.mxu0 0.0
        %809 = vmatpush1.msra.mxu0 0.0
        %810 = vmatprep.subr.mxu0 0.0
        %811 = vmatpush1.msra.mxu0 0.0
        %812 = vmatprep.mubr.f32.mxu0 0.0
        %813 = vmatmul.mubr.f32.gmra.mrb[0].mxu0 %v746
        %v814 = vpop.f32.mrb[0].mxu0
        %v815 = vadd.f32 0.0, %v814
        %v816 = vpop.f32.mrb[0].mxu0
        %817 = vdwg.mxu0
        %v819 = vsel %vm489, %v733, 0
        %821 = vmatprep.subr.mxu0 0.0
        %822 = vmatpush1.msra.mxu0 %v413
        %823 = vmatprep.subr.mxu0 0.0
        %824 = vmatpush1.msra.mxu0 0.0
        %825 = vmatprep.subr.mxu0 0.0
        %826 = vmatpush1.msra.mxu0 0.0
        %827 = vmatprep.subr.mxu0 0.0
        %828 = vmatpush1.msra.mxu0 0.0
        %829 = vmatprep.subr.mxu0 0.0
        %830 = vmatpush1.msra.mxu0 0.0
        %831 = vmatprep.subr.mxu0 0.0
        %832 = vmatpush1.msra.mxu0 0.0
        %833 = vmatprep.subr.mxu0 0.0
        %834 = vmatpush1.msra.mxu0 0.0
        %835 = vmatprep.subr.mxu0 0.0
        %836 = vmatpush1.msra.mxu0 0.0
        %837 = vmatprep.subr.mxu0 0.0
        %838 = vmatpush1.msra.mxu0 0.0
        %839 = vmatprep.subr.mxu0 0.0
        %840 = vmatpush1.msra.mxu0 0.0
        %841 = vmatprep.subr.mxu0 0.0
        %842 = vmatpush1.msra.mxu0 0.0
        %843 = vmatprep.subr.mxu0 0.0
        %844 = vmatpush1.msra.mxu0 0.0
        %845 = vmatprep.subr.mxu0 0.0
        %846 = vmatpush1.msra.mxu0 0.0
        %847 = vmatprep.subr.mxu0 0.0
        %848 = vmatpush1.msra.mxu0 0.0
        %849 = vmatprep.subr.mxu0 0.0
        %850 = vmatpush1.msra.mxu0 0.0
        %851 = vmatprep.subr.mxu0 0.0
        %852 = vmatpush1.msra.mxu0 0.0
        %853 = vmatprep.subr.mxu0 0.0
        %854 = vmatpush1.msra.mxu0 0.0
        %855 = vmatprep.subr.mxu0 0.0
        %856 = vmatpush1.msra.mxu0 0.0
        %857 = vmatprep.subr.mxu0 0.0
        %858 = vmatpush1.msra.mxu0 0.0
        %859 = vmatprep.subr.mxu0 0.0
        %860 = vmatpush1.msra.mxu0 0.0
        %861 = vmatprep.subr.mxu0 0.0
        %862 = vmatpush1.msra.mxu0 0.0
        %863 = vmatprep.subr.mxu0 0.0
        %864 = vmatpush1.msra.mxu0 0.0
        %865 = vmatprep.subr.mxu0 0.0
        %866 = vmatpush1.msra.mxu0 0.0
        %867 = vmatprep.subr.mxu0 0.0
        %868 = vmatpush1.msra.mxu0 0.0
        %869 = vmatprep.subr.mxu0 0.0
        %870 = vmatpush1.msra.mxu0 0.0
        %871 = vmatprep.subr.mxu0 0.0
        %872 = vmatpush1.msra.mxu0 0.0
        %873 = vmatprep.subr.mxu0 0.0
        %874 = vmatpush1.msra.mxu0 0.0
        %875 = vmatprep.subr.mxu0 0.0
        %876 = vmatpush1.msra.mxu0 0.0
        %877 = vmatprep.subr.mxu0 0.0
        %878 = vmatpush1.msra.mxu0 0.0
        %879 = vmatprep.subr.mxu0 0.0
        %880 = vmatpush1.msra.mxu0 0.0
        %881 = vmatprep.subr.mxu0 0.0
        %882 = vmatpush1.msra.mxu0 0.0
        %883 = vmatprep.subr.mxu0 0.0
        %884 = vmatpush1.msra.mxu0 0.0
        %885 = vmatprep.mubr.f32.mxu0 0.0
        %886 = vmatmul.mubr.f32.gmra.mrb[0].mxu0 %v819
        %v887 = vpop.f32.mrb[0].mxu0
        %v888 = vadd.f32 0.0, %v887
        %v889 = vpop.f32.mrb[0].mxu0
        %890 = vdwg.mxu0
        %v892 = vsel %vm489, %v735, 0
        %894 = vmatprep.subr.mxu0 0.0
        %895 = vmatpush1.msra.mxu0 %v483
        %896 = vmatprep.subr.mxu0 0.0
        %897 = vmatpush1.msra.mxu0 0.0
        %898 = vmatprep.subr.mxu0 0.0
        %899 = vmatpush1.msra.mxu0 0.0
        %900 = vmatprep.subr.mxu0 0.0
        %901 = vmatpush1.msra.mxu0 0.0
        %902 = vmatprep.subr.mxu0 0.0
        %903 = vmatpush1.msra.mxu0 0.0
        %904 = vmatprep.subr.mxu0 0.0
        %905 = vmatpush1.msra.mxu0 0.0
        %906 = vmatprep.subr.mxu0 0.0
        %907 = vmatpush1.msra.mxu0 0.0
        %908 = vmatprep.subr.mxu0 0.0
        %909 = vmatpush1.msra.mxu0 0.0
        %910 = vmatprep.subr.mxu0 0.0
        %911 = vmatpush1.msra.mxu0 0.0
        %912 = vmatprep.subr.mxu0 0.0
        %913 = vmatpush1.msra.mxu0 0.0
        %914 = vmatprep.subr.mxu0 0.0
        %915 = vmatpush1.msra.mxu0 0.0
        %916 = vmatprep.subr.mxu0 0.0
        %917 = vmatpush1.msra.mxu0 0.0
        %918 = vmatprep.subr.mxu0 0.0
        %919 = vmatpush1.msra.mxu0 0.0
        %920 = vmatprep.subr.mxu0 0.0
        %921 = vmatpush1.msra.mxu0 0.0
        %922 = vmatprep.subr.mxu0 0.0
        %923 = vmatpush1.msra.mxu0 0.0
        %924 = vmatprep.subr.mxu0 0.0
        %925 = vmatpush1.msra.mxu0 0.0
        %926 = vmatprep.subr.mxu0 0.0
        %927 = vmatpush1.msra.mxu0 0.0
        %928 = vmatprep.subr.mxu0 0.0
        %929 = vmatpush1.msra.mxu0 0.0
        %930 = vmatprep.subr.mxu0 0.0
        %931 = vmatpush1.msra.mxu0 0.0
        %932 = vmatprep.subr.mxu0 0.0
        %933 = vmatpush1.msra.mxu0 0.0
        %934 = vmatprep.subr.mxu0 0.0
        %935 = vmatpush1.msra.mxu0 0.0
        %936 = vmatprep.subr.mxu0 0.0
        %937 = vmatpush1.msra.mxu0 0.0
        %938 = vmatprep.subr.mxu0 0.0
        %939 = vmatpush1.msra.mxu0 0.0
        %940 = vmatprep.subr.mxu0 0.0
        %941 = vmatpush1.msra.mxu0 0.0
        %942 = vmatprep.subr.mxu0 0.0
        %943 = vmatpush1.msra.mxu0 0.0
        %944 = vmatprep.subr.mxu0 0.0
        %945 = vmatpush1.msra.mxu0 0.0
        %946 = vmatprep.subr.mxu0 0.0
        %947 = vmatpush1.msra.mxu0 0.0
        %948 = vmatprep.subr.mxu0 0.0
        %949 = vmatpush1.msra.mxu0 0.0
        %950 = vmatprep.subr.mxu0 0.0
        %951 = vmatpush1.msra.mxu0 0.0
        %952 = vmatprep.subr.mxu0 0.0
        %953 = vmatpush1.msra.mxu0 0.0
        %954 = vmatprep.subr.mxu0 0.0
        %955 = vmatpush1.msra.mxu0 0.0
        %956 = vmatprep.subr.mxu0 0.0
        %957 = vmatpush1.msra.mxu0 0.0
        %958 = vmatprep.mubr.f32.mxu0 0.0
        %959 = vmatmul.mubr.f32.gmra.mrb[0].mxu0 %v892
        %v960 = vpop.f32.mrb[0].mxu0
        %v961 = vadd.f32 0.0, %v960
        %v962 = vpop.f32.mrb[0].mxu0
        %963 = vdwg.mxu0
        %v964 = vrcp.pop %v738
        %v965 = vrcp.pop %v741
        %v966 = vrcp.pop %v744
        %v967 = vmul.f32 %v815, %v964
        %v968 = vmul.f32 %v888, %v965
        %v969 = vmul.f32 %v961, %v966
        %971 = vrot.lane.b32.xlu0 %v968, 8
        %v972 = vpop.permute.xlu0 %971
        %975 = vrot.lane.b32.xlu0 %v969, 16
        %v976 = vpop.permute.xlu0 %975
        %v978 = vsel %vm489, %v967, %v972
        %v979 = vsel %vm272, %v978, %v976
        %v980 = vld [vmem:[%s3] sm:$0xff]
        %v981 = vld [vmem:[%s3 + $0x8] sm:$0xff]
        %v982 = vld [vmem:[%s3 + $0x10] sm:$0xff]
        %v983 = vld [vmem:[%s3 + $0x18] sm:$0xff]
        %v984 = vld [vmem:[%s3 + $0x20] sm:$0xff]
        %v985 = vld [vmem:[%s3 + $0x28] sm:$0xff]
        %v986 = vld [vmem:[%s3 + $0x30] sm:$0xff]
        %v987 = vld [vmem:[%s3 + $0x38] sm:$0xff]
        %v988 = vld [vmem:[%s3 + $0x40] sm:$0xff]
        %vm989 = vcmask 195584
        %v991 = vsel %vm989, %v979, 0
        %993 = vmatprep.subr.mxu0 0.0
        %994 = vmatpush1.msra.mxu0 %v980
        %995 = vmatprep.subr.mxu0 0.0
        %996 = vmatpush1.msra.mxu0 %v981
        %997 = vmatprep.subr.mxu0 0.0
        %998 = vmatpush1.msra.mxu0 %v982
        %999 = vmatprep.subr.mxu0 0.0
        %1000 = vmatpush1.msra.mxu0 0.0
        %1001 = vmatprep.subr.mxu0 0.0
        %1002 = vmatpush1.msra.mxu0 0.0
        %1003 = vmatprep.subr.mxu0 0.0
        %1004 = vmatpush1.msra.mxu0 0.0
        %1005 = vmatprep.subr.mxu0 0.0
        %1006 = vmatpush1.msra.mxu0 0.0
        %1007 = vmatprep.subr.mxu0 0.0
        %1008 = vmatpush1.msra.mxu0 0.0
        %1009 = vmatprep.subr.mxu0 0.0
        %1010 = vmatpush1.msra.mxu0 0.0
        %1011 = vmatprep.subr.mxu0 0.0
        %1012 = vmatpush1.msra.mxu0 0.0
        %1013 = vmatprep.subr.mxu0 0.0
        %1014 = vmatpush1.msra.mxu0 0.0
        %1015 = vmatprep.subr.mxu0 0.0
        %1016 = vmatpush1.msra.mxu0 0.0
        %1017 = vmatprep.subr.mxu0 0.0
        %1018 = vmatpush1.msra.mxu0 0.0
        %1019 = vmatprep.subr.mxu0 0.0
        %1020 = vmatpush1.msra.mxu0 0.0
        %1021 = vmatprep.subr.mxu0 0.0
        %1022 = vmatpush1.msra.mxu0 0.0
        %1023 = vmatprep.subr.mxu0 0.0
        %1024 = vmatpush1.msra.mxu0 0.0
        %1025 = vmatprep.subr.mxu0 0.0
        %1026 = vmatpush1.msra.mxu0 0.0
        %1027 = vmatprep.subr.mxu0 0.0
        %1028 = vmatpush1.msra.mxu0 0.0
        %1029 = vmatprep.subr.mxu0 0.0
        %1030 = vmatpush1.msra.mxu0 0.0
        %1031 = vmatprep.subr.mxu0 0.0
        %1032 = vmatpush1.msra.mxu0 0.0
        %1033 = vmatprep.subr.mxu0 0.0
        %1034 = vmatpush1.msra.mxu0 0.0
        %1035 = vmatprep.subr.mxu0 0.0
        %1036 = vmatpush1.msra.mxu0 0.0
        %1037 = vmatprep.subr.mxu0 0.0
        %1038 = vmatpush1.msra.mxu0 0.0
        %1039 = vmatprep.subr.mxu0 0.0
        %1040 = vmatpush1.msra.mxu0 0.0
        %1041 = vmatprep.subr.mxu0 0.0
        %1042 = vmatpush1.msra.mxu0 0.0
        %1043 = vmatprep.subr.mxu0 0.0
        %1044 = vmatpush1.msra.mxu0 0.0
        %1045 = vmatprep.subr.mxu0 0.0
        %1046 = vmatpush1.msra.mxu0 0.0
        %1047 = vmatprep.subr.mxu0 0.0
        %1048 = vmatpush1.msra.mxu0 0.0
        %1049 = vmatprep.subr.mxu0 0.0
        %1050 = vmatpush1.msra.mxu0 0.0
        %1051 = vmatprep.subr.mxu0 0.0
        %1052 = vmatpush1.msra.mxu0 0.0
        %1053 = vmatprep.subr.mxu0 0.0
        %1054 = vmatpush1.msra.mxu0 0.0
        %1055 = vmatprep.subr.mxu0 0.0
        %1056 = vmatpush1.msra.mxu0 0.0
        %1057 = vmatprep.mubr.f32.mxu0 0.0
        %1058 = vmatmul.mubr.f32.gmra.mrb[0].mxu0 %v991
        %v1059 = vpop.f32.mrb[0].mxu0
        %v1060 = vadd.f32 0.0, %v1059
        %v1061 = vpop.f32.mrb[0].mxu0
        %1062 = vdwg.mxu0
        %1063 = vmatprep.subr.mxu0 0.0
        %1064 = vmatpush1.msra.mxu0 %v983
        %1065 = vmatprep.subr.mxu0 0.0
        %1066 = vmatpush1.msra.mxu0 %v984
        %1067 = vmatprep.subr.mxu0 0.0
        %1068 = vmatpush1.msra.mxu0 %v985
        %1069 = vmatprep.subr.mxu0 0.0
        %1070 = vmatpush1.msra.mxu0 0.0
        %1071 = vmatprep.subr.mxu0 0.0
        %1072 = vmatpush1.msra.mxu0 0.0
        %1073 = vmatprep.subr.mxu0 0.0
        %1074 = vmatpush1.msra.mxu0 0.0
        %1075 = vmatprep.subr.mxu0 0.0
        %1076 = vmatpush1.msra.mxu0 0.0
        %1077 = vmatprep.subr.mxu0 0.0
        %1078 = vmatpush1.msra.mxu0 0.0
        %1079 = vmatprep.subr.mxu0 0.0
        %1080 = vmatpush1.msra.mxu0 0.0
        %1081 = vmatprep.subr.mxu0 0.0
        %1082 = vmatpush1.msra.mxu0 0.0
        %1083 = vmatprep.subr.mxu0 0.0
        %1084 = vmatpush1.msra.mxu0 0.0
        %1085 = vmatprep.subr.mxu0 0.0
        %1086 = vmatpush1.msra.mxu0 0.0
        %1087 = vmatprep.subr.mxu0 0.0
        %1088 = vmatpush1.msra.mxu0 0.0
        %1089 = vmatprep.subr.mxu0 0.0
        %1090 = vmatpush1.msra.mxu0 0.0
        %1091 = vmatprep.subr.mxu0 0.0
        %1092 = vmatpush1.msra.mxu0 0.0
        %1093 = vmatprep.subr.mxu0 0.0
        %1094 = vmatpush1.msra.mxu0 0.0
        %1095 = vmatprep.subr.mxu0 0.0
        %1096 = vmatpush1.msra.mxu0 0.0
        %1097 = vmatprep.subr.mxu0 0.0
        %1098 = vmatpush1.msra.mxu0 0.0
        %1099 = vmatprep.subr.mxu0 0.0
        %1100 = vmatpush1.msra.mxu0 0.0
        %1101 = vmatprep.subr.mxu0 0.0
        %1102 = vmatpush1.msra.mxu0 0.0
        %1103 = vmatprep.subr.mxu0 0.0
        %1104 = vmatpush1.msra.mxu0 0.0
        %1105 = vmatprep.subr.mxu0 0.0
        %1106 = vmatpush1.msra.mxu0 0.0
        %1107 = vmatprep.subr.mxu0 0.0
        %1108 = vmatpush1.msra.mxu0 0.0
        %1109 = vmatprep.subr.mxu0 0.0
        %1110 = vmatpush1.msra.mxu0 0.0
        %1111 = vmatprep.subr.mxu0 0.0
        %1112 = vmatpush1.msra.mxu0 0.0
        %1113 = vmatprep.subr.mxu0 0.0
        %1114 = vmatpush1.msra.mxu0 0.0
        %1115 = vmatprep.subr.mxu0 0.0
        %1116 = vmatpush1.msra.mxu0 0.0
        %1117 = vmatprep.subr.mxu0 0.0
        %1118 = vmatpush1.msra.mxu0 0.0
        %1119 = vmatprep.subr.mxu0 0.0
        %1120 = vmatpush1.msra.mxu0 0.0
        %1121 = vmatprep.subr.mxu0 0.0
        %1122 = vmatpush1.msra.mxu0 0.0
        %1123 = vmatprep.subr.mxu0 0.0
        %1124 = vmatpush1.msra.mxu0 0.0
        %1125 = vmatprep.subr.mxu0 0.0
        %1126 = vmatpush1.msra.mxu0 0.0
        %1127 = vmatprep.mubr.f32.mxu0 0.0
        %1128 = vmatmul.mubr.f32.gmra.mrb[0].mxu0 %v991
        %v1129 = vpop.f32.mrb[0].mxu0
        %v1130 = vadd.f32 0.0, %v1129
        %v1131 = vpop.f32.mrb[0].mxu0
        %1132 = vdwg.mxu0
        %1133 = vmatprep.subr.mxu0 0.0
        %1134 = vmatpush1.msra.mxu0 %v986
        %1135 = vmatprep.subr.mxu0 0.0
        %1136 = vmatpush1.msra.mxu0 %v987
        %1137 = vmatprep.subr.mxu0 0.0
        %1138 = vmatpush1.msra.mxu0 %v988
        %1139 = vmatprep.subr.mxu0 0.0
        %1140 = vmatpush1.msra.mxu0 0.0
        %1141 = vmatprep.subr.mxu0 0.0
        %1142 = vmatpush1.msra.mxu0 0.0
        %1143 = vmatprep.subr.mxu0 0.0
        %1144 = vmatpush1.msra.mxu0 0.0
        %1145 = vmatprep.subr.mxu0 0.0
        %1146 = vmatpush1.msra.mxu0 0.0
        %1147 = vmatprep.subr.mxu0 0.0
        %1148 = vmatpush1.msra.mxu0 0.0
        %1149 = vmatprep.subr.mxu0 0.0
        %1150 = vmatpush1.msra.mxu0 0.0
        %1151 = vmatprep.subr.mxu0 0.0
        %1152 = vmatpush1.msra.mxu0 0.0
        %1153 = vmatprep.subr.mxu0 0.0
        %1154 = vmatpush1.msra.mxu0 0.0
        %1155 = vmatprep.subr.mxu0 0.0
        %1156 = vmatpush1.msra.mxu0 0.0
        %1157 = vmatprep.subr.mxu0 0.0
        %1158 = vmatpush1.msra.mxu0 0.0
        %1159 = vmatprep.subr.mxu0 0.0
        %1160 = vmatpush1.msra.mxu0 0.0
        %1161 = vmatprep.subr.mxu0 0.0
        %1162 = vmatpush1.msra.mxu0 0.0
        %1163 = vmatprep.subr.mxu0 0.0
        %1164 = vmatpush1.msra.mxu0 0.0
        %1165 = vmatprep.subr.mxu0 0.0
        %1166 = vmatpush1.msra.mxu0 0.0
        %1167 = vmatprep.subr.mxu0 0.0
        %1168 = vmatpush1.msra.mxu0 0.0
        %1169 = vmatprep.subr.mxu0 0.0
        %1170 = vmatpush1.msra.mxu0 0.0
        %1171 = vmatprep.subr.mxu0 0.0
        %1172 = vmatpush1.msra.mxu0 0.0
        %1173 = vmatprep.subr.mxu0 0.0
        %1174 = vmatpush1.msra.mxu0 0.0
        %1175 = vmatprep.subr.mxu0 0.0
        %1176 = vmatpush1.msra.mxu0 0.0
        %1177 = vmatprep.subr.mxu0 0.0
        %1178 = vmatpush1.msra.mxu0 0.0
        %1179 = vmatprep.subr.mxu0 0.0
        %1180 = vmatpush1.msra.mxu0 0.0
        %1181 = vmatprep.subr.mxu0 0.0
        %1182 = vmatpush1.msra.mxu0 0.0
        %1183 = vmatprep.subr.mxu0 0.0
        %1184 = vmatpush1.msra.mxu0 0.0
        %1185 = vmatprep.subr.mxu0 0.0
        %1186 = vmatpush1.msra.mxu0 0.0
        %1187 = vmatprep.subr.mxu0 0.0
        %1188 = vmatpush1.msra.mxu0 0.0
        %1189 = vmatprep.subr.mxu0 0.0
        %1190 = vmatpush1.msra.mxu0 0.0
        %1191 = vmatprep.subr.mxu0 0.0
        %1192 = vmatpush1.msra.mxu0 0.0
        %1193 = vmatprep.subr.mxu0 0.0
        %1194 = vmatpush1.msra.mxu0 0.0
        %1195 = vmatprep.subr.mxu0 0.0
        %1196 = vmatpush1.msra.mxu0 0.0
        %1197 = vmatprep.mubr.f32.mxu0 0.0
        %1198 = vmatmul.mubr.f32.gmra.mrb[0].mxu0 %v991
        %v1199 = vpop.f32.mrb[0].mxu0
        %v1200 = vadd.f32 0.0, %v1199
        %v1201 = vpop.f32.mrb[0].mxu0
        %1202 = vdwg.mxu0
        %v1203 = vmul.f32 %v1060, 0.35355338
        %v1204 = vmul.f32 %v1130, 0.35355338
        %v1205 = vmul.f32 %v1200, 0.35355338
        %v1207 = vsel %vm489, %v1203, 0
        %v1210 = vsel %vm489, %v1060, 0
        %1212 = vmatprep.subr.mxu0 0.0
        %1213 = vmatpush1.xpose.msra.mxu0 %v1210
        %1214 = vmatprep.subr.mxu0 0.0
        %1215 = vmatpush1.xpose.msra.mxu0 0.0
        %1216 = vmatprep.subr.mxu0 0.0
        %1217 = vmatpush1.xpose.msra.mxu0 0.0
        %1218 = vmatprep.subr.mxu0 0.0
        %1219 = vmatpush1.xpose.msra.mxu0 0.0
        %1220 = vmatprep.subr.mxu0 0.0
        %1221 = vmatpush1.xpose.msra.mxu0 0.0
        %1222 = vmatprep.subr.mxu0 0.0
        %1223 = vmatpush1.xpose.msra.mxu0 0.0
        %1224 = vmatprep.subr.mxu0 0.0
        %1225 = vmatpush1.xpose.msra.mxu0 0.0
        %1226 = vmatprep.subr.mxu0 0.0
        %1227 = vmatpush1.xpose.msra.mxu0 0.0
        %1228 = vmatprep.subr.mxu0 0.0
        %1229 = vmatpush1.xpose.msra.mxu0 0.0
        %1230 = vmatprep.subr.mxu0 0.0
        %1231 = vmatpush1.xpose.msra.mxu0 0.0
        %1232 = vmatprep.subr.mxu0 0.0
        %1233 = vmatpush1.xpose.msra.mxu0 0.0
        %1234 = vmatprep.subr.mxu0 0.0
        %1235 = vmatpush1.xpose.msra.mxu0 0.0
        %1236 = vmatprep.subr.mxu0 0.0
        %1237 = vmatpush1.xpose.msra.mxu0 0.0
        %1238 = vmatprep.subr.mxu0 0.0
        %1239 = vmatpush1.xpose.msra.mxu0 0.0
        %1240 = vmatprep.subr.mxu0 0.0
        %1241 = vmatpush1.xpose.msra.mxu0 0.0
        %1242 = vmatprep.subr.mxu0 0.0
        %1243 = vmatpush1.xpose.msra.mxu0 0.0
        %1244 = vmatprep.subr.mxu0 0.0
        %1245 = vmatpush1.xpose.msra.mxu0 0.0
        %1246 = vmatprep.subr.mxu0 0.0
        %1247 = vmatpush1.xpose.msra.mxu0 0.0
        %1248 = vmatprep.subr.mxu0 0.0
        %1249 = vmatpush1.xpose.msra.mxu0 0.0
        %1250 = vmatprep.subr.mxu0 0.0
        %1251 = vmatpush1.xpose.msra.mxu0 0.0
        %1252 = vmatprep.subr.mxu0 0.0
        %1253 = vmatpush1.xpose.msra.mxu0 0.0
        %1254 = vmatprep.subr.mxu0 0.0
        %1255 = vmatpush1.xpose.msra.mxu0 0.0
        %1256 = vmatprep.subr.mxu0 0.0
        %1257 = vmatpush1.xpose.msra.mxu0 0.0
        %1258 = vmatprep.subr.mxu0 0.0
        %1259 = vmatpush1.xpose.msra.mxu0 0.0
        %1260 = vmatprep.subr.mxu0 0.0
        %1261 = vmatpush1.xpose.msra.mxu0 0.0
        %1262 = vmatprep.subr.mxu0 0.0
        %1263 = vmatpush1.xpose.msra.mxu0 0.0
        %1264 = vmatprep.subr.mxu0 0.0
        %1265 = vmatpush1.xpose.msra.mxu0 0.0
        %1266 = vmatprep.subr.mxu0 0.0
        %1267 = vmatpush1.xpose.msra.mxu0 0.0
        %1268 = vmatprep.subr.mxu0 0.0
        %1269 = vmatpush1.xpose.msra.mxu0 0.0
        %1270 = vmatprep.subr.mxu0 0.0
        %1271 = vmatpush1.xpose.msra.mxu0 0.0
        %1272 = vmatprep.subr.mxu0 0.0
        %1273 = vmatpush1.xpose.msra.mxu0 0.0
        %1274 = vmatprep.subr.mxu0 0.0
        %1275 = vmatpush1.xpose.msra.mxu0 0.0
        %1276 = vmatprep.mubr.f32.mxu0 0.0
        %1277 = vmatmul.mubr.f32.gmra.mrb[0].mxu0 %v1207
        %v1278 = vpop.f32.mrb[0].mxu0
        %v1279 = vadd.f32 %v264, %v1278
        %v1280 = vpop.f32.mrb[0].mxu0
        %1281 = vdwg.mxu0
        %v1283 = vsel %vm489, %v1204, 0
        %v1286 = vsel %vm489, %v1130, 0
        %1288 = vmatprep.subr.mxu0 0.0
        %1289 = vmatpush1.xpose.msra.mxu0 %v1286
        %1290 = vmatprep.subr.mxu0 0.0
        %1291 = vmatpush1.xpose.msra.mxu0 0.0
        %1292 = vmatprep.subr.mxu0 0.0
        %1293 = vmatpush1.xpose.msra.mxu0 0.0
        %1294 = vmatprep.subr.mxu0 0.0
        %1295 = vmatpush1.xpose.msra.mxu0 0.0
        %1296 = vmatprep.subr.mxu0 0.0
        %1297 = vmatpush1.xpose.msra.mxu0 0.0
        %1298 = vmatprep.subr.mxu0 0.0
        %1299 = vmatpush1.xpose.msra.mxu0 0.0
        %1300 = vmatprep.subr.mxu0 0.0
        %1301 = vmatpush1.xpose.msra.mxu0 0.0
        %1302 = vmatprep.subr.mxu0 0.0
        %1303 = vmatpush1.xpose.msra.mxu0 0.0
        %1304 = vmatprep.subr.mxu0 0.0
        %1305 = vmatpush1.xpose.msra.mxu0 0.0
        %1306 = vmatprep.subr.mxu0 0.0
        %1307 = vmatpush1.xpose.msra.mxu0 0.0
        %1308 = vmatprep.subr.mxu0 0.0
        %1309 = vmatpush1.xpose.msra.mxu0 0.0
        %1310 = vmatprep.subr.mxu0 0.0
        %1311 = vmatpush1.xpose.msra.mxu0 0.0
        %1312 = vmatprep.subr.mxu0 0.0
        %1313 = vmatpush1.xpose.msra.mxu0 0.0
        %1314 = vmatprep.subr.mxu0 0.0
        %1315 = vmatpush1.xpose.msra.mxu0 0.0
        %1316 = vmatprep.subr.mxu0 0.0
        %1317 = vmatpush1.xpose.msra.mxu0 0.0
        %1318 = vmatprep.subr.mxu0 0.0
        %1319 = vmatpush1.xpose.msra.mxu0 0.0
        %1320 = vmatprep.subr.mxu0 0.0
        %1321 = vmatpush1.xpose.msra.mxu0 0.0
        %1322 = vmatprep.subr.mxu0 0.0
        %1323 = vmatpush1.xpose.msra.mxu0 0.0
        %1324 = vmatprep.subr.mxu0 0.0
        %1325 = vmatpush1.xpose.msra.mxu0 0.0
        %1326 = vmatprep.subr.mxu0 0.0
        %1327 = vmatpush1.xpose.msra.mxu0 0.0
        %1328 = vmatprep.subr.mxu0 0.0
        %1329 = vmatpush1.xpose.msra.mxu0 0.0
        %1330 = vmatprep.subr.mxu0 0.0
        %1331 = vmatpush1.xpose.msra.mxu0 0.0
        %1332 = vmatprep.subr.mxu0 0.0
        %1333 = vmatpush1.xpose.msra.mxu0 0.0
        %1334 = vmatprep.subr.mxu0 0.0
        %1335 = vmatpush1.xpose.msra.mxu0 0.0
        %1336 = vmatprep.subr.mxu0 0.0
        %1337 = vmatpush1.xpose.msra.mxu0 0.0
        %1338 = vmatprep.subr.mxu0 0.0
        %1339 = vmatpush1.xpose.msra.mxu0 0.0
        %1340 = vmatprep.subr.mxu0 0.0
        %1341 = vmatpush1.xpose.msra.mxu0 0.0
        %1342 = vmatprep.subr.mxu0 0.0
        %1343 = vmatpush1.xpose.msra.mxu0 0.0
        %1344 = vmatprep.subr.mxu0 0.0
        %1345 = vmatpush1.xpose.msra.mxu0 0.0
        %1346 = vmatprep.subr.mxu0 0.0
        %1347 = vmatpush1.xpose.msra.mxu0 0.0
        %1348 = vmatprep.subr.mxu0 0.0
        %1349 = vmatpush1.xpose.msra.mxu0 0.0
        %1350 = vmatprep.subr.mxu0 0.0
        %1351 = vmatpush1.xpose.msra.mxu0 0.0
        %1352 = vmatprep.mubr.f32.mxu0 0.0
        %1353 = vmatmul.mubr.f32.gmra.mrb[0].mxu0 %v1283
        %v1354 = vpop.f32.mrb[0].mxu0
        %v1355 = vadd.f32 %v264, %v1354
        %v1356 = vpop.f32.mrb[0].mxu0
        %1357 = vdwg.mxu0
        %v1359 = vsel %vm489, %v1205, 0
        %v1362 = vsel %vm489, %v1200, 0
        %1364 = vmatprep.subr.mxu0 0.0
        %1365 = vmatpush1.xpose.msra.mxu0 %v1362
        %1366 = vmatprep.subr.mxu0 0.0
        %1367 = vmatpush1.xpose.msra.mxu0 0.0
        %1368 = vmatprep.subr.mxu0 0.0
        %1369 = vmatpush1.xpose.msra.mxu0 0.0
        %1370 = vmatprep.subr.mxu0 0.0
        %1371 = vmatpush1.xpose.msra.mxu0 0.0
        %1372 = vmatprep.subr.mxu0 0.0
        %1373 = vmatpush1.xpose.msra.mxu0 0.0
        %1374 = vmatprep.subr.mxu0 0.0
        %1375 = vmatpush1.xpose.msra.mxu0 0.0
        %1376 = vmatprep.subr.mxu0 0.0
        %1377 = vmatpush1.xpose.msra.mxu0 0.0
        %1378 = vmatprep.subr.mxu0 0.0
        %1379 = vmatpush1.xpose.msra.mxu0 0.0
        %1380 = vmatprep.subr.mxu0 0.0
        %1381 = vmatpush1.xpose.msra.mxu0 0.0
        %1382 = vmatprep.subr.mxu0 0.0
        %1383 = vmatpush1.xpose.msra.mxu0 0.0
        %1384 = vmatprep.subr.mxu0 0.0
        %1385 = vmatpush1.xpose.msra.mxu0 0.0
        %1386 = vmatprep.subr.mxu0 0.0
        %1387 = vmatpush1.xpose.msra.mxu0 0.0
        %1388 = vmatprep.subr.mxu0 0.0
        %1389 = vmatpush1.xpose.msra.mxu0 0.0
        %1390 = vmatprep.subr.mxu0 0.0
        %1391 = vmatpush1.xpose.msra.mxu0 0.0
        %1392 = vmatprep.subr.mxu0 0.0
        %1393 = vmatpush1.xpose.msra.mxu0 0.0
        %1394 = vmatprep.subr.mxu0 0.0
        %1395 = vmatpush1.xpose.msra.mxu0 0.0
        %1396 = vmatprep.subr.mxu0 0.0
        %1397 = vmatpush1.xpose.msra.mxu0 0.0
        %1398 = vmatprep.subr.mxu0 0.0
        %1399 = vmatpush1.xpose.msra.mxu0 0.0
        %1400 = vmatprep.subr.mxu0 0.0
        %1401 = vmatpush1.xpose.msra.mxu0 0.0
        %1402 = vmatprep.subr.mxu0 0.0
        %1403 = vmatpush1.xpose.msra.mxu0 0.0
        %1404 = vmatprep.subr.mxu0 0.0
        %1405 = vmatpush1.xpose.msra.mxu0 0.0
        %1406 = vmatprep.subr.mxu0 0.0
        %1407 = vmatpush1.xpose.msra.mxu0 0.0
        %1408 = vmatprep.subr.mxu0 0.0
        %1409 = vmatpush1.xpose.msra.mxu0 0.0
        %1410 = vmatprep.subr.mxu0 0.0
        %1411 = vmatpush1.xpose.msra.mxu0 0.0
        %1412 = vmatprep.subr.mxu0 0.0
        %1413 = vmatpush1.xpose.msra.mxu0 0.0
        %1414 = vmatprep.subr.mxu0 0.0
        %1415 = vmatpush1.xpose.msra.mxu0 0.0
        %1416 = vmatprep.subr.mxu0 0.0
        %1417 = vmatpush1.xpose.msra.mxu0 0.0
        %1418 = vmatprep.subr.mxu0 0.0
        %1419 = vmatpush1.xpose.msra.mxu0 0.0
        %1420 = vmatprep.subr.mxu0 0.0
        %1421 = vmatpush1.xpose.msra.mxu0 0.0
        %1422 = vmatprep.subr.mxu0 0.0
        %1423 = vmatpush1.xpose.msra.mxu0 0.0
        %1424 = vmatprep.subr.mxu0 0.0
        %1425 = vmatpush1.xpose.msra.mxu0 0.0
        %1426 = vmatprep.subr.mxu0 0.0
        %1427 = vmatpush1.xpose.msra.mxu0 0.0
        %1428 = vmatprep.mubr.f32.mxu0 0.0
        %1429 = vmatmul.mubr.f32.gmra.mrb[0].mxu0 %v1359
        %v1430 = vpop.f32.mrb[0].mxu0
        %v1431 = vadd.f32 %v264, %v1430
        %v1432 = vpop.f32.mrb[0].mxu0
        %1433 = vdwg.mxu0
        %v1434 = vsel %vm489, %v1279, -inf
        %1435 = vmax.xlane.f32.xlu0 %v1434
        %v1436 = vpop.xlane.xlu0 %1435
        %v1437 = vsel %vm489, %v1355, -inf
        %1438 = vmax.xlane.f32.xlu0 %v1437
        %v1439 = vpop.xlane.xlu0 %1438
        %v1440 = vsel %vm489, %v1431, -inf
        %1441 = vmax.xlane.f32.xlu0 %v1440
        %v1442 = vpop.xlane.xlu0 %1441
        %v1443 = vsub.f32 %v1279, %v1436
        %v1444 = vsub.f32 %v1355, %v1439
        %v1445 = vsub.f32 %v1431, %v1442
        %v1446 = vmul.f32 %v1443, 1.442695
        %v1447 = vpow.pop %v1446
        %v1448 = vmul.f32 %v1444, 1.442695
        %v1449 = vpow.pop %v1448
        %v1450 = vmul.f32 %v1445, 1.442695
        %v1451 = vpow.pop %v1450
        %v1452 = vsel %vm489, %v1447, 0.0
        %1453 = vadd.xlane.f32.xlu0 %v1452
        %v1454 = vpop.xlane.xlu0 %1453
        %v1455 = vsel %vm489, %v1449, 0.0
        %1456 = vadd.xlane.f32.xlu0 %v1455
        %v1457 = vpop.xlane.xlu0 %1456
        %v1458 = vsel %vm489, %v1451, 0.0
        %1459 = vadd.xlane.f32.xlu0 %v1458
        %v1460 = vpop.xlane.xlu0 %1459
        %v1462 = vsel %vm489, %v1447, 0
        %1464 = vmatprep.subr.mxu0 0.0
        %1465 = vmatpush1.msra.mxu0 %v1060
        %1466 = vmatprep.subr.mxu0 0.0
        %1467 = vmatpush1.msra.mxu0 0.0
        %1468 = vmatprep.subr.mxu0 0.0
        %1469 = vmatpush1.msra.mxu0 0.0
        %1470 = vmatprep.subr.mxu0 0.0
        %1471 = vmatpush1.msra.mxu0 0.0
        %1472 = vmatprep.subr.mxu0 0.0
        %1473 = vmatpush1.msra.mxu0 0.0
        %1474 = vmatprep.subr.mxu0 0.0
        %1475 = vmatpush1.msra.mxu0 0.0
        %1476 = vmatprep.subr.mxu0 0.0
        %1477 = vmatpush1.msra.mxu0 0.0
        %1478 = vmatprep.subr.mxu0 0.0
        %1479 = vmatpush1.msra.mxu0 0.0
        %1480 = vmatprep.subr.mxu0 0.0
        %1481 = vmatpush1.msra.mxu0 0.0
        %1482 = vmatprep.subr.mxu0 0.0
        %1483 = vmatpush1.msra.mxu0 0.0
        %1484 = vmatprep.subr.mxu0 0.0
        %1485 = vmatpush1.msra.mxu0 0.0
        %1486 = vmatprep.subr.mxu0 0.0
        %1487 = vmatpush1.msra.mxu0 0.0
        %1488 = vmatprep.subr.mxu0 0.0
        %1489 = vmatpush1.msra.mxu0 0.0
        %1490 = vmatprep.subr.mxu0 0.0
        %1491 = vmatpush1.msra.mxu0 0.0
        %1492 = vmatprep.subr.mxu0 0.0
        %1493 = vmatpush1.msra.mxu0 0.0
        %1494 = vmatprep.subr.mxu0 0.0
        %1495 = vmatpush1.msra.mxu0 0.0
        %1496 = vmatprep.subr.mxu0 0.0
        %1497 = vmatpush1.msra.mxu0 0.0
        %1498 = vmatprep.subr.mxu0 0.0
        %1499 = vmatpush1.msra.mxu0 0.0
        %1500 = vmatprep.subr.mxu0 0.0
        %1501 = vmatpush1.msra.mxu0 0.0
        %1502 = vmatprep.subr.mxu0 0.0
        %1503 = vmatpush1.msra.mxu0 0.0
        %1504 = vmatprep.subr.mxu0 0.0
        %1505 = vmatpush1.msra.mxu0 0.0
        %1506 = vmatprep.subr.mxu0 0.0
        %1507 = vmatpush1.msra.mxu0 0.0
        %1508 = vmatprep.subr.mxu0 0.0
        %1509 = vmatpush1.msra.mxu0 0.0
        %1510 = vmatprep.subr.mxu0 0.0
        %1511 = vmatpush1.msra.mxu0 0.0
        %1512 = vmatprep.subr.mxu0 0.0
        %1513 = vmatpush1.msra.mxu0 0.0
        %1514 = vmatprep.subr.mxu0 0.0
        %1515 = vmatpush1.msra.mxu0 0.0
        %1516 = vmatprep.subr.mxu0 0.0
        %1517 = vmatpush1.msra.mxu0 0.0
        %1518 = vmatprep.subr.mxu0 0.0
        %1519 = vmatpush1.msra.mxu0 0.0
        %1520 = vmatprep.subr.mxu0 0.0
        %1521 = vmatpush1.msra.mxu0 0.0
        %1522 = vmatprep.subr.mxu0 0.0
        %1523 = vmatpush1.msra.mxu0 0.0
        %1524 = vmatprep.subr.mxu0 0.0
        %1525 = vmatpush1.msra.mxu0 0.0
        %1526 = vmatprep.subr.mxu0 0.0
        %1527 = vmatpush1.msra.mxu0 0.0
        %1528 = vmatprep.mubr.f32.mxu0 0.0
        %1529 = vmatmul.mubr.f32.gmra.mrb[0].mxu0 %v1462
        %v1530 = vpop.f32.mrb[0].mxu0
        %v1531 = vadd.f32 0.0, %v1530
        %v1532 = vpop.f32.mrb[0].mxu0
        %1533 = vdwg.mxu0
        %v1535 = vsel %vm489, %v1449, 0
        %1537 = vmatprep.subr.mxu0 0.0
        %1538 = vmatpush1.msra.mxu0 %v1130
        %1539 = vmatprep.subr.mxu0 0.0
        %1540 = vmatpush1.msra.mxu0 0.0
        %1541 = vmatprep.subr.mxu0 0.0
        %1542 = vmatpush1.msra.mxu0 0.0
        %1543 = vmatprep.subr.mxu0 0.0
        %1544 = vmatpush1.msra.mxu0 0.0
        %1545 = vmatprep.subr.mxu0 0.0
        %1546 = vmatpush1.msra.mxu0 0.0
        %1547 = vmatprep.subr.mxu0 0.0
        %1548 = vmatpush1.msra.mxu0 0.0
        %1549 = vmatprep.subr.mxu0 0.0
        %1550 = vmatpush1.msra.mxu0 0.0
        %1551 = vmatprep.subr.mxu0 0.0
        %1552 = vmatpush1.msra.mxu0 0.0
        %1553 = vmatprep.subr.mxu0 0.0
        %1554 = vmatpush1.msra.mxu0 0.0
        %1555 = vmatprep.subr.mxu0 0.0
        %1556 = vmatpush1.msra.mxu0 0.0
        %1557 = vmatprep.subr.mxu0 0.0
        %1558 = vmatpush1.msra.mxu0 0.0
        %1559 = vmatprep.subr.mxu0 0.0
        %1560 = vmatpush1.msra.mxu0 0.0
        %1561 = vmatprep.subr.mxu0 0.0
        %1562 = vmatpush1.msra.mxu0 0.0
        %1563 = vmatprep.subr.mxu0 0.0
        %1564 = vmatpush1.msra.mxu0 0.0
        %1565 = vmatprep.subr.mxu0 0.0
        %1566 = vmatpush1.msra.mxu0 0.0
        %1567 = vmatprep.subr.mxu0 0.0
        %1568 = vmatpush1.msra.mxu0 0.0
        %1569 = vmatprep.subr.mxu0 0.0
        %1570 = vmatpush1.msra.mxu0 0.0
        %1571 = vmatprep.subr.mxu0 0.0
        %1572 = vmatpush1.msra.mxu0 0.0
        %1573 = vmatprep.subr.mxu0 0.0
        %1574 = vmatpush1.msra.mxu0 0.0
        %1575 = vmatprep.subr.mxu0 0.0
        %1576 = vmatpush1.msra.mxu0 0.0
        %1577 = vmatprep.subr.mxu0 0.0
        %1578 = vmatpush1.msra.mxu0 0.0
        %1579 = vmatprep.subr.mxu0 0.0
        %1580 = vmatpush1.msra.mxu0 0.0
        %1581 = vmatprep.subr.mxu0 0.0
        %1582 = vmatpush1.msra.mxu0 0.0
        %1583 = vmatprep.subr.mxu0 0.0
        %1584 = vmatpush1.msra.mxu0 0.0
        %1585 = vmatprep.subr.mxu0 0.0
        %1586 = vmatpush1.msra.mxu0 0.0
        %1587 = vmatprep.subr.mxu0 0.0
        %1588 = vmatpush1.msra.mxu0 0.0
        %1589 = vmatprep.subr.mxu0 0.0
        %1590 = vmatpush1.msra.mxu0 0.0
        %1591 = vmatprep.subr.mxu0 0.0
        %1592 = vmatpush1.msra.mxu0 0.0
        %1593 = vmatprep.subr.mxu0 0.0
        %1594 = vmatpush1.msra.mxu0 0.0
        %1595 = vmatprep.subr.mxu0 0.0
        %1596 = vmatpush1.msra.mxu0 0.0
        %1597 = vmatprep.subr.mxu0 0.0
        %1598 = vmatpush1.msra.mxu0 0.0
        %1599 = vmatprep.subr.mxu0 0.0
        %1600 = vmatpush1.msra.mxu0 0.0
        %1601 = vmatprep.mubr.f32.mxu0 0.0
        %1602 = vmatmul.mubr.f32.gmra.mrb[0].mxu0 %v1535
        %v1603 = vpop.f32.mrb[0].mxu0
        %v1604 = vadd.f32 0.0, %v1603
        %v1605 = vpop.f32.mrb[0].mxu0
        %1606 = vdwg.mxu0
        %v1608 = vsel %vm489, %v1451, 0
        %1610 = vmatprep.subr.mxu0 0.0
        %1611 = vmatpush1.msra.mxu0 %v1200
        %1612 = vmatprep.subr.mxu0 0.0
        %1613 = vmatpush1.msra.mxu0 0.0
        %1614 = vmatprep.subr.mxu0 0.0
        %1615 = vmatpush1.msra.mxu0 0.0
        %1616 = vmatprep.subr.mxu0 0.0
        %1617 = vmatpush1.msra.mxu0 0.0
        %1618 = vmatprep.subr.mxu0 0.0
        %1619 = vmatpush1.msra.mxu0 0.0
        %1620 = vmatprep.subr.mxu0 0.0
        %1621 = vmatpush1.msra.mxu0 0.0
        %1622 = vmatprep.subr.mxu0 0.0
        %1623 = vmatpush1.msra.mxu0 0.0
        %1624 = vmatprep.subr.mxu0 0.0
        %1625 = vmatpush1.msra.mxu0 0.0
        %1626 = vmatprep.subr.mxu0 0.0
        %1627 = vmatpush1.msra.mxu0 0.0
        %1628 = vmatprep.subr.mxu0 0.0
        %1629 = vmatpush1.msra.mxu0 0.0
        %1630 = vmatprep.subr.mxu0 0.0
        %1631 = vmatpush1.msra.mxu0 0.0
        %1632 = vmatprep.subr.mxu0 0.0
        %1633 = vmatpush1.msra.mxu0 0.0
        %1634 = vmatprep.subr.mxu0 0.0
        %1635 = vmatpush1.msra.mxu0 0.0
        %1636 = vmatprep.subr.mxu0 0.0
        %1637 = vmatpush1.msra.mxu0 0.0
        %1638 = vmatprep.subr.mxu0 0.0
        %1639 = vmatpush1.msra.mxu0 0.0
        %1640 = vmatprep.subr.mxu0 0.0
        %1641 = vmatpush1.msra.mxu0 0.0
        %1642 = vmatprep.subr.mxu0 0.0
        %1643 = vmatpush1.msra.mxu0 0.0
        %1644 = vmatprep.subr.mxu0 0.0
        %1645 = vmatpush1.msra.mxu0 0.0
        %1646 = vmatprep.subr.mxu0 0.0
        %1647 = vmatpush1.msra.mxu0 0.0
        %1648 = vmatprep.subr.mxu0 0.0
        %1649 = vmatpush1.msra.mxu0 0.0
        %1650 = vmatprep.subr.mxu0 0.0
        %1651 = vmatpush1.msra.mxu0 0.0
        %1652 = vmatprep.subr.mxu0 0.0
        %1653 = vmatpush1.msra.mxu0 0.0
        %1654 = vmatprep.subr.mxu0 0.0
        %1655 = vmatpush1.msra.mxu0 0.0
        %1656 = vmatprep.subr.mxu0 0.0
        %1657 = vmatpush1.msra.mxu0 0.0
        %1658 = vmatprep.subr.mxu0 0.0
        %1659 = vmatpush1.msra.mxu0 0.0
        %1660 = vmatprep.subr.mxu0 0.0
        %1661 = vmatpush1.msra.mxu0 0.0
        %1662 = vmatprep.subr.mxu0 0.0
        %1663 = vmatpush1.msra.mxu0 0.0
        %1664 = vmatprep.subr.mxu0 0.0
        %1665 = vmatpush1.msra.mxu0 0.0
        %1666 = vmatprep.subr.mxu0 0.0
        %1667 = vmatpush1.msra.mxu0 0.0
        %1668 = vmatprep.subr.mxu0 0.0
        %1669 = vmatpush1.msra.mxu0 0.0
        %1670 = vmatprep.subr.mxu0 0.0
        %1671 = vmatpush1.msra.mxu0 0.0
        %1672 = vmatprep.subr.mxu0 0.0
        %1673 = vmatpush1.msra.mxu0 0.0
        %1674 = vmatprep.mubr.f32.mxu0 0.0
        %1675 = vmatmul.mubr.f32.gmra.mrb[0].mxu0 %v1608
        %v1676 = vpop.f32.mrb[0].mxu0
        %v1677 = vadd.f32 0.0, %v1676
        %v1678 = vpop.f32.mrb[0].mxu0
        %1679 = vdwg.mxu0
        %v1680 = vrcp.pop %v1454
        %v1681 = vrcp.pop %v1457
        %v1682 = vrcp.pop %v1460
        %v1683 = vmul.f32 %v1531, %v1680
        %v1684 = vmul.f32 %v1604, %v1681
        %v1685 = vmul.f32 %v1677, %v1682
        %1687 = vrot.lane.b32.xlu0 %v1684, 8
        %v1688 = vpop.permute.xlu0 %1687
        %1691 = vrot.lane.b32.xlu0 %v1685, 16
        %v1692 = vpop.permute.xlu0 %1691
        %v1694 = vsel %vm489, %v1683, %v1688
        %v1695 = vsel %vm272, %v1694, %v1692
        %v1696 = vld [vmem:[%s4] sm:$0xff]
        %v1697 = vld [vmem:[%s4 + $0x8] sm:$0xff]
        %v1698 = vld [vmem:[%s4 + $0x10] sm:$0xff]
        %v1699 = vld [vmem:[%s5] sm:$0x1]
        %v1701 = vlaneseq
        %v1702 = vshrl.u32 %v1701, 7
        %v1703 = vsub.s32 0, %v1702
        %v1704 = vrot.slane %v1699, %v1703
        %v1707 = vsel %vm989, %v1695, 0
        %1709 = vmatprep.subr.mxu0 0.0
        %1710 = vmatpush1.msra.mxu0 %v1696
        %1711 = vmatprep.subr.mxu0 0.0
        %1712 = vmatpush1.msra.mxu0 %v1697
        %1713 = vmatprep.subr.mxu0 0.0
        %1714 = vmatpush1.msra.mxu0 %v1698
        %1715 = vmatprep.subr.mxu0 0.0
        %1716 = vmatpush1.msra.mxu0 0.0
        %1717 = vmatprep.subr.mxu0 0.0
        %1718 = vmatpush1.msra.mxu0 0.0
        %1719 = vmatprep.subr.mxu0 0.0
        %1720 = vmatpush1.msra.mxu0 0.0
        %1721 = vmatprep.subr.mxu0 0.0
        %1722 = vmatpush1.msra.mxu0 0.0
        %1723 = vmatprep.subr.mxu0 0.0
        %1724 = vmatpush1.msra.mxu0 0.0
        %1725 = vmatprep.subr.mxu0 0.0
        %1726 = vmatpush1.msra.mxu0 0.0
        %1727 = vmatprep.subr.mxu0 0.0
        %1728 = vmatpush1.msra.mxu0 0.0
        %1729 = vmatprep.subr.mxu0 0.0
        %1730 = vmatpush1.msra.mxu0 0.0
        %1731 = vmatprep.subr.mxu0 0.0
        %1732 = vmatpush1.msra.mxu0 0.0
        %1733 = vmatprep.subr.mxu0 0.0
        %1734 = vmatpush1.msra.mxu0 0.0
        %1735 = vmatprep.subr.mxu0 0.0
        %1736 = vmatpush1.msra.mxu0 0.0
        %1737 = vmatprep.subr.mxu0 0.0
        %1738 = vmatpush1.msra.mxu0 0.0
        %1739 = vmatprep.subr.mxu0 0.0
        %1740 = vmatpush1.msra.mxu0 0.0
        %1741 = vmatprep.subr.mxu0 0.0
        %1742 = vmatpush1.msra.mxu0 0.0
        %1743 = vmatprep.subr.mxu0 0.0
        %1744 = vmatpush1.msra.mxu0 0.0
        %1745 = vmatprep.subr.mxu0 0.0
        %1746 = vmatpush1.msra.mxu0 0.0
        %1747 = vmatprep.subr.mxu0 0.0
        %1748 = vmatpush1.msra.mxu0 0.0
        %1749 = vmatprep.subr.mxu0 0.0
        %1750 = vmatpush1.msra.mxu0 0.0
        %1751 = vmatprep.subr.mxu0 0.0
        %1752 = vmatpush1.msra.mxu0 0.0
        %1753 = vmatprep.subr.mxu0 0.0
        %1754 = vmatpush1.msra.mxu0 0.0
        %1755 = vmatprep.subr.mxu0 0.0
        %1756 = vmatpush1.msra.mxu0 0.0
        %1757 = vmatprep.subr.mxu0 0.0
        %1758 = vmatpush1.msra.mxu0 0.0
        %1759 = vmatprep.subr.mxu0 0.0
        %1760 = vmatpush1.msra.mxu0 0.0
        %1761 = vmatprep.subr.mxu0 0.0
        %1762 = vmatpush1.msra.mxu0 0.0
        %1763 = vmatprep.subr.mxu0 0.0
        %1764 = vmatpush1.msra.mxu0 0.0
        %1765 = vmatprep.subr.mxu0 0.0
        %1766 = vmatpush1.msra.mxu0 0.0
        %1767 = vmatprep.subr.mxu0 0.0
        %1768 = vmatpush1.msra.mxu0 0.0
        %1769 = vmatprep.subr.mxu0 0.0
        %1770 = vmatpush1.msra.mxu0 0.0
        %1771 = vmatprep.subr.mxu0 0.0
        %1772 = vmatpush1.msra.mxu0 0.0
        %1773 = vmatprep.mubr.f32.mxu0 0.0
        %1774 = vmatmul.mubr.f32.gmra.mrb[0].mxu0 %v1707
        %v1775 = vpop.f32.mrb[0].mxu0
        %v1776 = vadd.f32 %v1704, %v1775
        %v1777 = vpop.f32.mrb[0].mxu0
        %1778 = vdwg.mxu0
        %1779 = vst.msk [vmem:[%s255] sm:$0xff] %vm489, %v1776
        %s1780 = sand.u32 %s164, 1
        %s1781 = scalar_lea.sflag [#allocation3], %s1780
        %s1782 = sand.u32 %s164, 1
        %s1783 = smul.addr %s1782, 8
        %s1784 = scalar_lea.vmem [#allocation2], %s1783
        // Predicated region
        $region45: #{tpu_custom_call.1} parent=43 // pred_check
          %p1785 = pneg %p174
        $region46: #{tpu_custom_call.1} parent=43 // pred_check_branch
          %1787 = sbr.rel (%p1785) target = $region48
        $region47: #{tpu_custom_call.1} parent=43 // pred_region
          %s1789 = ssub.s32 128, 128
          %1790 = vsyncadd %s1781, %s1789
          %s1791 = smul.addr %s20, 128
          %s1792 = scalar_lea.hbm %s6, %s1791
          %s1794 = sshll.u32 %s1784, 4
          %s1795 = int_to_ptr.vmem [resolvable:$true] %s1794
          %1797 = dma.vmem_to_hbm [thread:$0]  %s1795, 128, %s1792, %s1781
        $region48: #{tpu_custom_call.1} parent=43 // pred_fallthru
          _
      $region44: #{tpu_custom_call.1} parent=5 // pred_fallthru
        _
      %p1798 = scmp.le.s32.totalorder 2, %s15
      // Predicated region
      $region49: #{tpu_custom_call.1} parent=5 // pred_check
        %p1799 = pneg %p1798
      $region50: #{tpu_custom_call.1} parent=5 // pred_check_branch
        %1801 = sbr.rel (%p1799) target = $region52
      $region51: #{tpu_custom_call.1} parent=5 // pred_region
        %s1802 = ssub.s32 %s15, 2
        // Predicated region
        $region53: #{tpu_custom_call.1} parent=51 // pred_check
          %p1803 = pneg %p180
        $region54: #{tpu_custom_call.1} parent=51 // pred_check_branch
          %1805 = sbr.rel (%p1803) target = $region56
        $region55: #{tpu_custom_call.1} parent=51 // pred_region
          %s1806 = sand.u32 %s165, 1
          %s1807 = scalar_lea.sflag [#allocation3], %s1806
          %s1808 = sand.u32 %s165, 1
          %s1809 = smul.addr %s1808, 8
          %s1810 = scalar_lea.vmem [#allocation2], %s1809
          %1811 = dma.done %s1807, 128
        $region56: #{tpu_custom_call.1} parent=51 // pred_fallthru
          _
      $region52: #{tpu_custom_call.1} parent=5 // pred_fallthru
        _
    $region6: #{tpu_custom_call.1} parent=1 // loop_footer
      %s19 = sadd.s32 1, %s15
    $region7: #{tpu_custom_call.1} parent=1 // loop_footer_branch
      %14 = sbr.rel target = $region3
    $region8: #{tpu_custom_call.1} parent=1 // loop_exit
      _
    %1812 = vsyncpa [#allocation3], 1
    %s1813 = scalar_lea.sflag [#allocation3], 1
    %1814 = vsyncpa %s1813, 1

</llo_original>
